<compile_context>
chip_gen: v7x
topology: tpu7x:2x2x1
jax: 0.10.0
libtpu: 0.0.40
codegen_flags: <defaults>
</compile_context>

<pallas_src>
import math
from functools import partial

import numpy as np
import jax
import jax.numpy as jnp
from jax.experimental import pallas as pl
from jax.experimental.pallas import tpu as pltpu


def _erf(z):
    # Abramowitz & Stegun 7.1.26, |abs err| < 1.5e-7: exact-GELU (erf) semantics
    # within float32, built only from ops that lower on Mosaic.  The divide is
    # kept exact; pl.reciprocal(approx=True) would move it to the EUP but the
    # GELU epilogue is not the bottleneck (review: "treat as last").
    a1, a2, a3, a4, a5 = 0.254829592, -0.284496736, 1.421413741, -1.453152027, 1.061405429
    p = 0.3275911
    s = jnp.where(z >= 0.0, 1.0, -1.0)
    za = jnp.abs(z)
    t = 1.0 / (1.0 + p * za)
    poly = ((((a5 * t + a4) * t + a3) * t + a2) * t + a1) * t
    return s * (1.0 - poly * jnp.exp(-za * za))


def _gelu_exact(h):
    return 0.5 * h * (1.0 + _erf(h * (1.0 / math.sqrt(2.0))))


def nob_kernel(x_ref, ffwd_ref, finv_ref, wr_ref, wi_ref, wskip_ref, o_ref,
               *, bt, c, hw):
    # x_ref:    [C*Bt, HW] f32, channel-major rows (row = ch*Bt + b); also the residual.
    # ffwd_ref: [HW, 2*HW] bf16, [F2_real | F2_imag]
    # finv_ref: [2*HW, HW] bf16, [[IF2_real], [-IF2_imag]]
    # wr_ref/wi_ref: [C, C*Bt, HW] bf16, pre-expanded spectral diag weight:
    #               wr_ref[o, i*Bt + b, :] = Wr[i, o, :]  (same for all b)
    # wskip_ref: [C*C] f32 in SMEM, 1x1-conv weight, index = o_out*C + i_in
    x = x_ref[...]                                              # f32 [M, HW]

    # ---- SpectralConv forward transform: one fused bf16 MXU matmul ----------
    xt = jnp.dot(x.astype(jnp.bfloat16), ffwd_ref[...],
                 preferred_element_type=jnp.float32)            # [M, 2*HW]
    xr = xt[:, :hw]                                             # Re(x_hat)
    xi = xt[:, hw:]                                             # Im(x_hat)

    # Residual channel blocks reused by the f32 inner-skip accumulation.
    x_blk = [x[i * bt:(i + 1) * bt, :] for i in range(c)]

    # ---- diagonal spectral channel mix + f32 inner 1x1 skip, all in vregs ---
    # Per output channel o: full-slab [M, HW] products with the pre-expanded
    # weights (aligned VPU work, no broadcasts), then a small cross-channel
    # block reduction.  Results are kept as values and concatenated; nothing
    # bounces through VMEM scratch.
    yr_rows, yi_rows, sk_rows = [], [], []
    for o in range(c):
        wr_o = wr_ref[o].astype(jnp.float32)                    # [M, HW]
        wi_o = wi_ref[o].astype(jnp.float32)
        pr = wr_o * xr - wi_o * xi                              # Re contributions
        pi = wr_o * xi + wi_o * xr                              # Im contributions
        acc_r = pr[0:bt, :]
        acc_i = pi[0:bt, :]
        acc_s = wskip_ref[o * c + 0] * x_blk[0]                 # f32 skip (SMEM scalar)
        for i in range(1, c):
            acc_r = acc_r + pr[i * bt:(i + 1) * bt, :]
            acc_i = acc_i + pi[i * bt:(i + 1) * bt, :]
            acc_s = acc_s + wskip_ref[o * c + i] * x_blk[i]
        yr_rows.append(acc_r)                                   # [Bt, HW]
        yi_rows.append(acc_i)
        sk_rows.append(acc_s)

    yr = jnp.concatenate(yr_rows, axis=0)                       # [M, HW]
    yi = jnp.concatenate(yi_rows, axis=0)                       # [M, HW]
    skip = jnp.concatenate(sk_rows, axis=0)                     # [M, HW] f32
    spec = jnp.concatenate([yr, yi], axis=1)                    # [M, 2*HW]

    # ---- inverse transform (real part): one fused bf16 MXU matmul -----------
    y = jnp.dot(spec.astype(jnp.bfloat16), finv_ref[...],
                preferred_element_type=jnp.float32)             # [M, HW]

    # ---- norm0 = Id; + inner skip; exact GELU; norm1/drop = Id; + residual --
    h = _gelu_exact(y + skip)
    o_ref[...] = (h + x).astype(o_ref.dtype)                    # lane-dense store


def neural_operator_block(x_nchw, f2r, f2i, if2r, if2i, wr, wi, wskip):
    """x_nchw: [B, C, H, W] float32.  Returns [B, C, H, W] float32."""
    B, C, H, W = x_nchw.shape
    HW = H * W
    M = C * B                                                   # folded matmul M

    # Channel-major row slab (row = c*B + b): contiguous per-channel row blocks,
    # sublane-dense M, lane-dense HW.  (At production scale express this with
    # BlockSpec index_maps instead of host-side transposes.)
    x2 = jnp.transpose(x_nchw.reshape(B, C, HW), (1, 0, 2)).reshape(M, HW)
    x2 = x2.astype(jnp.float32)

    # Fused / bf16 constants built in the wrapper (layout plumbing, not compute).
    ffwd = jnp.concatenate([f2r, f2i], axis=1).astype(jnp.bfloat16)      # [HW, 2HW]
    finv = jnp.concatenate([if2r, -if2i], axis=0).astype(jnp.bfloat16)   # [2HW, HW]

    # Pre-expanded spectral weights: wr_exp[o, i*B + b, :] = Wr[i, o, :]
    # (row repeated B times) so the in-kernel multiply is a full-slab aligned
    # elementwise op with no runtime sublane broadcasts.
    wr_exp = jnp.repeat(jnp.transpose(wr, (1, 0, 2)), B, axis=1).astype(jnp.bfloat16)  # [C, M, HW]
    wi_exp = jnp.repeat(jnp.transpose(wi, (1, 0, 2)), B, axis=1).astype(jnp.bfloat16)  # [C, M, HW]
    wsk = wskip.reshape(C * C).astype(jnp.float32)                       # idx = o*C + i

    grid_spec = pltpu.PrefetchScalarGridSpec(
        num_scalar_prefetch=0,
        grid=(1,),                                   # one fat step: whole batch folded
        in_specs=[
            # activation / residual (small, default pipelining)
            pl.BlockSpec((M, HW), lambda g: (0, 0)),
            # constants: single-buffered -- they dominate HBM traffic and a
            # 1-step grid gains nothing from double-buffering them.
            pl.BlockSpec((HW, 2 * HW), lambda g: (0, 0),
                         pipeline_mode=pl.Buffered(1)),          # fused forward DFT, bf16
            pl.BlockSpec((2 * HW, HW), lambda g: (0, 0),
                         pipeline_mode=pl.Buffered(1)),          # fused inverse DFT, bf16
            pl.BlockSpec((C, M, HW), lambda g: (0, 0, 0),
                         pipeline_mode=pl.Buffered(1)),          # spectral weight (real), bf16
            pl.BlockSpec((C, M, HW), lambda g: (0, 0, 0),
                         pipeline_mode=pl.Buffered(1)),          # spectral weight (imag), bf16
            pl.BlockSpec(memory_space=pltpu.MemorySpace.SMEM),   # 1x1-conv weight scalars, f32
        ],
        out_specs=pl.BlockSpec((M, HW), lambda g: (0, 0)),
    )

    out2 = pl.pallas_call(
        partial(nob_kernel, bt=B, c=C, hw=HW),
        out_shape=jax.ShapeDtypeStruct((M, HW), jnp.float32),
        grid_spec=grid_spec,
        compiler_params=pltpu.CompilerParams(
            dimension_semantics=("parallel",),      # >=2 parallel steps at prod sizes (v7x 2 TCs)
            vmem_limit_bytes=32 * 1024 * 1024,      # actual footprint ~0.6 MiB; < v7x 64 MiB budget
        ),
    )(x2, ffwd, finv, wr_exp, wi_exp, wsk)

    return jnp.transpose(out2.reshape(C, B, HW), (1, 0, 2)).reshape(B, C, H, W)


if __name__ == "__main__":
    B, C, H, W = 2, 4, 16, 16        # batch, embed_dim, nlat, nlon
    HW = H * W

    # ---- forward / inverse transform matrices (2D DFT via Kronecker product) ----
    def dft(n):
        k = np.arange(n)
        return np.exp(-2j * np.pi * np.outer(k, k) / n)

    F2 = np.kron(dft(H), dft(W))          # [HW, HW] forward transform
    IF2 = np.conj(F2) / (H * W)           # [HW, HW] inverse transform

    f2r = jnp.asarray(F2.real, jnp.float32)
    f2i = jnp.asarray(F2.imag, jnp.float32)
    if2r = jnp.asarray(IF2.real, jnp.float32)
    if2i = jnp.asarray(IF2.imag, jnp.float32)

    # ---- deterministic parameter init (shapes from the module __init__) ----
    key = jax.random.PRNGKey(0)
    kx, kw, ks = jax.random.split(key, 3)

    # SpectralConv diagonal weight: (in, out, modes_lat, modes_lon) complex.
    w = math.sqrt(1.0 / C) * jax.random.normal(kw, (C, C, H, W, 2), jnp.float32)
    wr = w[..., 0].reshape(C, C, HW)
    wi = w[..., 1].reshape(C, C, HW)
    # inner_skip: Conv2d(C, C, kernel=1, bias=False), std = sqrt(1.0 / embed_dim)
    wskip = math.sqrt(1.0 / C) * jax.random.normal(ks, (C, C), jnp.float32)

    x_nchw = jax.random.normal(kx, (B, C, H, W), jnp.float32)

    out = neural_operator_block(x_nchw, f2r, f2i, if2r, if2i, wr, wi, wskip)
    jax.block_until_ready(out)

    # ---- matched-precision reference (numpy float64 over the same bf16-rounded
    #      operands the kernel uses, so the check isolates kernel correctness;
    #      remaining differences are f32-accumulation order + erf polynomial).
    #      Note (review concern): this does not measure drift of the bf16
    #      transform path vs. the fp32 PyTorch module; the skip path is kept
    #      f32 in-kernel for exactly that reason. ----
    def bf16_round(a):
        a32 = jnp.asarray(np.asarray(a, np.float32))
        return np.asarray(a32.astype(jnp.bfloat16).astype(jnp.float32), np.float64)

    xf = np.asarray(x_nchw, np.float64).reshape(B, C, HW)
    xq = bf16_round(xf)                                   # kernel casts x for the fwd matmul
    f2r_q, f2i_q = bf16_round(f2r), bf16_round(f2i)
    if2r_q, if2i_q = bf16_round(if2r), bf16_round(if2i)
    wr_q, wi_q = bf16_round(wr), bf16_round(wi)
    wsk_np = np.asarray(wskip, np.float64)

    xr = xq @ f2r_q
    xi = xq @ f2i_q
    yr = np.einsum('iom,bim->bom', wr_q, xr) - np.einsum('iom,bim->bom', wi_q, xi)
    yi = np.einsum('iom,bim->bom', wr_q, xi) + np.einsum('iom,bim->bom', wi_q, xr)
    yr_b, yi_b = bf16_round(yr), bf16_round(yi)           # kernel feeds the inverse matmul bf16
    y = yr_b @ if2r_q - yi_b @ if2i_q
    skip = np.einsum('oi,bim->bom', wsk_np, xf)           # skip path stays f32 in the kernel
    pre = y + skip
    h = 0.5 * pre * (1.0 + np.vectorize(math.erf)(pre / math.sqrt(2.0)))
    ref = (h + xf).reshape(B, C, H, W)

    np.testing.assert_allclose(np.asarray(out, np.float64), ref, rtol=2e-3, atol=2e-3)
    print("KERNEL_OK")
</pallas_src>

<mosaic_0001>
module attributes {stable_mosaic.version = 11 : i64} {
  func.func @nob_kernel(%arg0: i32, %arg1: memref<8x256xf32, #tpu.memory_space<vmem>>, %arg2: memref<256x512xbf16, #tpu.memory_space<vmem>>, %arg3: memref<512x256xbf16, #tpu.memory_space<vmem>>, %arg4: memref<4x8x256xbf16, #tpu.memory_space<vmem>>, %arg5: memref<4x8x256xbf16, #tpu.memory_space<vmem>>, %arg6: memref<16xf32, #tpu.memory_space<smem>>, %arg7: memref<8x256xf32, #tpu.memory_space<vmem>>) attributes {dimension_semantics = [#tpu.dimension_semantics<parallel>], iteration_bounds = array<i64: 1>, scalar_prefetch = 0 : i64, scratch_operands = 0 : i64, tpu.core_type = #tpu.core_type<tc>, window_params = [{pipeline_mode = #tpu.pipeline_mode<synchronous>, transform_indices = @transform_0, window_bounds = array<i64: 8, 256>}, {pipeline_mode = #tpu.pipeline_mode<synchronous>, transform_indices = @transform_1, window_bounds = array<i64: 256, 512>}, {pipeline_mode = #tpu.pipeline_mode<synchronous>, transform_indices = @transform_2, window_bounds = array<i64: 512, 256>}, {pipeline_mode = #tpu.pipeline_mode<synchronous>, transform_indices = @transform_3, window_bounds = array<i64: 4, 8, 256>}, {pipeline_mode = #tpu.pipeline_mode<synchronous>, transform_indices = @transform_4, window_bounds = array<i64: 4, 8, 256>}, {transform_indices = @transform_5, window_bounds = array<i64: 16>}, {pipeline_mode = #tpu.pipeline_mode<synchronous>, transform_indices = @transform_6, window_bounds = array<i64: 8, 256>}]} {
    %c0 = arith.constant 0 : index
    %c0_0 = arith.constant 0 : index
    %0 = vector.load %arg1[%c0, %c0_0] : memref<8x256xf32, #tpu.memory_space<vmem>>, vector<8x256xf32>
    %1 = arith.truncf %0 : vector<8x256xf32> to vector<8x256xbf16>
    %c0_1 = arith.constant 0 : index
    %c0_2 = arith.constant 0 : index
    %2 = vector.load %arg2[%c0_1, %c0_2] : memref<256x512xbf16, #tpu.memory_space<vmem>>, vector<256x512xbf16>
    %cst = arith.constant dense<0.000000e+00> : vector<8x512xf32>
    %3 = tpu.matmul %1, %2, %cst {dimension_numbers = #tpu.dot_dimension_numbers<[1], [0], [0], [1], [0, 0, 1, 1], [], []>} : vector<8x256xbf16>, vector<256x512xbf16>, vector<8x512xf32> -> vector<8x512xf32>
    %4 = vector.extract_strided_slice %3 {offsets = [0, 0], sizes = [8, 256], strides = [1, 1]} : vector<8x512xf32> to vector<8x256xf32>
    %5 = vector.extract_strided_slice %3 {offsets = [0, 256], sizes = [8, 256], strides = [1, 1]} : vector<8x512xf32> to vector<8x256xf32>
    %6 = vector.extract_strided_slice %0 {offsets = [0, 0], sizes = [2, 256], strides = [1, 1]} : vector<8x256xf32> to vector<2x256xf32>
    %7 = vector.extract_strided_slice %0 {offsets = [2, 0], sizes = [2, 256], strides = [1, 1]} : vector<8x256xf32> to vector<2x256xf32>
    %8 = vector.extract_strided_slice %0 {offsets = [4, 0], sizes = [2, 256], strides = [1, 1]} : vector<8x256xf32> to vector<2x256xf32>
    %9 = vector.extract_strided_slice %0 {offsets = [6, 0], sizes = [2, 256], strides = [1, 1]} : vector<8x256xf32> to vector<2x256xf32>
    %c0_3 = arith.constant 0 : index
    %c0_4 = arith.constant 0 : index
    %c0_5 = arith.constant 0 : index
    %10 = vector.load %arg4[%c0_3, %c0_4, %c0_5] : memref<4x8x256xbf16, #tpu.memory_space<vmem>>, vector<1x8x256xbf16>
    %11 = vector.shape_cast %10 : vector<1x8x256xbf16> to vector<8x256xbf16>
    %12 = arith.extf %11 : vector<8x256xbf16> to vector<8x256xf32>
    %c0_6 = arith.constant 0 : index
    %c0_7 = arith.constant 0 : index
    %c0_8 = arith.constant 0 : index
    %13 = vector.load %arg5[%c0_6, %c0_7, %c0_8] : memref<4x8x256xbf16, #tpu.memory_space<vmem>>, vector<1x8x256xbf16>
    %14 = vector.shape_cast %13 : vector<1x8x256xbf16> to vector<8x256xbf16>
    %15 = arith.extf %14 : vector<8x256xbf16> to vector<8x256xf32>
    %16 = arith.mulf %12, %4 : vector<8x256xf32>
    %17 = arith.mulf %15, %5 : vector<8x256xf32>
    %18 = arith.subf %16, %17 : vector<8x256xf32>
    %19 = arith.mulf %12, %5 : vector<8x256xf32>
    %20 = arith.mulf %15, %4 : vector<8x256xf32>
    %21 = arith.addf %19, %20 : vector<8x256xf32>
    %22 = vector.extract_strided_slice %18 {offsets = [0, 0], sizes = [2, 256], strides = [1, 1]} : vector<8x256xf32> to vector<2x256xf32>
    %23 = vector.extract_strided_slice %21 {offsets = [0, 0], sizes = [2, 256], strides = [1, 1]} : vector<8x256xf32> to vector<2x256xf32>
    %c0_9 = arith.constant 0 : index
    %24 = memref.load %arg6[%c0_9] : memref<16xf32, #tpu.memory_space<smem>>
    %25 = vector.broadcast %24 : f32 to vector<2x256xf32>
    %26 = arith.mulf %25, %6 : vector<2x256xf32>
    %27 = vector.extract_strided_slice %18 {offsets = [2, 0], sizes = [2, 256], strides = [1, 1]} : vector<8x256xf32> to vector<2x256xf32>
    %28 = arith.addf %22, %27 : vector<2x256xf32>
    %29 = vector.extract_strided_slice %21 {offsets = [2, 0], sizes = [2, 256], strides = [1, 1]} : vector<8x256xf32> to vector<2x256xf32>
    %30 = arith.addf %23, %29 : vector<2x256xf32>
    %c1 = arith.constant 1 : index
    %31 = memref.load %arg6[%c1] : memref<16xf32, #tpu.memory_space<smem>>
    %32 = vector.broadcast %31 : f32 to vector<2x256xf32>
    %33 = arith.mulf %32, %7 : vector<2x256xf32>
    %34 = arith.addf %26, %33 : vector<2x256xf32>
    %35 = vector.extract_strided_slice %18 {offsets = [4, 0], sizes = [2, 256], strides = [1, 1]} : vector<8x256xf32> to vector<2x256xf32>
    %36 = arith.addf %28, %35 : vector<2x256xf32>
    %37 = vector.extract_strided_slice %21 {offsets = [4, 0], sizes = [2, 256], strides = [1, 1]} : vector<8x256xf32> to vector<2x256xf32>
    %38 = arith.addf %30, %37 : vector<2x256xf32>
    %c2 = arith.constant 2 : index
    %39 = memref.load %arg6[%c2] : memref<16xf32, #tpu.memory_space<smem>>
    %40 = vector.broadcast %39 : f32 to vector<2x256xf32>
    %41 = arith.mulf %40, %8 : vector<2x256xf32>
    %42 = arith.addf %34, %41 : vector<2x256xf32>
    %43 = vector.extract_strided_slice %18 {offsets = [6, 0], sizes = [2, 256], strides = [1, 1]} : vector<8x256xf32> to vector<2x256xf32>
    %44 = arith.addf %36, %43 : vector<2x256xf32>
    %45 = vector.extract_strided_slice %21 {offsets = [6, 0], sizes = [2, 256], strides = [1, 1]} : vector<8x256xf32> to vector<2x256xf32>
    %46 = arith.addf %38, %45 : vector<2x256xf32>
    %c3 = arith.constant 3 : index
    %47 = memref.load %arg6[%c3] : memref<16xf32, #tpu.memory_space<smem>>
    %48 = vector.broadcast %47 : f32 to vector<2x256xf32>
    %49 = arith.mulf %48, %9 : vector<2x256xf32>
    %50 = arith.addf %42, %49 : vector<2x256xf32>
    %c1_10 = arith.constant 1 : index
    %c0_11 = arith.constant 0 : index
    %c0_12 = arith.constant 0 : index
    %51 = vector.load %arg4[%c1_10, %c0_11, %c0_12] : memref<4x8x256xbf16, #tpu.memory_space<vmem>>, vector<1x8x256xbf16>
    %52 = vector.shape_cast %51 : vector<1x8x256xbf16> to vector<8x256xbf16>
    %53 = arith.extf %52 : vector<8x256xbf16> to vector<8x256xf32>
    %c1_13 = arith.constant 1 : index
    %c0_14 = arith.constant 0 : index
    %c0_15 = arith.constant 0 : index
    %54 = vector.load %arg5[%c1_13, %c0_14, %c0_15] : memref<4x8x256xbf16, #tpu.memory_space<vmem>>, vector<1x8x256xbf16>
    %55 = vector.shape_cast %54 : vector<1x8x256xbf16> to vector<8x256xbf16>
    %56 = arith.extf %55 : vector<8x256xbf16> to vector<8x256xf32>
    %57 = arith.mulf %53, %4 : vector<8x256xf32>
    %58 = arith.mulf %56, %5 : vector<8x256xf32>
    %59 = arith.subf %57, %58 : vector<8x256xf32>
    %60 = arith.mulf %53, %5 : vector<8x256xf32>
    %61 = arith.mulf %56, %4 : vector<8x256xf32>
    %62 = arith.addf %60, %61 : vector<8x256xf32>
    %63 = vector.extract_strided_slice %59 {offsets = [0, 0], sizes = [2, 256], strides = [1, 1]} : vector<8x256xf32> to vector<2x256xf32>
    %64 = vector.extract_strided_slice %62 {offsets = [0, 0], sizes = [2, 256], strides = [1, 1]} : vector<8x256xf32> to vector<2x256xf32>
    %c4 = arith.constant 4 : index
    %65 = memref.load %arg6[%c4] : memref<16xf32, #tpu.memory_space<smem>>
    %66 = vector.broadcast %65 : f32 to vector<2x256xf32>
    %67 = arith.mulf %66, %6 : vector<2x256xf32>
    %68 = vector.extract_strided_slice %59 {offsets = [2, 0], sizes = [2, 256], strides = [1, 1]} : vector<8x256xf32> to vector<2x256xf32>
    %69 = arith.addf %63, %68 : vector<2x256xf32>
    %70 = vector.extract_strided_slice %62 {offsets = [2, 0], sizes = [2, 256], strides = [1, 1]} : vector<8x256xf32> to vector<2x256xf32>
    %71 = arith.addf %64, %70 : vector<2x256xf32>
    %c5 = arith.constant 5 : index
    %72 = memref.load %arg6[%c5] : memref<16xf32, #tpu.memory_space<smem>>
    %73 = vector.broadcast %72 : f32 to vector<2x256xf32>
    %74 = arith.mulf %73, %7 : vector<2x256xf32>
    %75 = arith.addf %67, %74 : vector<2x256xf32>
    %76 = vector.extract_strided_slice %59 {offsets = [4, 0], sizes = [2, 256], strides = [1, 1]} : vector<8x256xf32> to vector<2x256xf32>
    %77 = arith.addf %69, %76 : vector<2x256xf32>
    %78 = vector.extract_strided_slice %62 {offsets = [4, 0], sizes = [2, 256], strides = [1, 1]} : vector<8x256xf32> to vector<2x256xf32>
    %79 = arith.addf %71, %78 : vector<2x256xf32>
    %c6 = arith.constant 6 : index
    %80 = memref.load %arg6[%c6] : memref<16xf32, #tpu.memory_space<smem>>
    %81 = vector.broadcast %80 : f32 to vector<2x256xf32>
    %82 = arith.mulf %81, %8 : vector<2x256xf32>
    %83 = arith.addf %75, %82 : vector<2x256xf32>
    %84 = vector.extract_strided_slice %59 {offsets = [6, 0], sizes = [2, 256], strides = [1, 1]} : vector<8x256xf32> to vector<2x256xf32>
    %85 = arith.addf %77, %84 : vector<2x256xf32>
    %86 = vector.extract_strided_slice %62 {offsets = [6, 0], sizes = [2, 256], strides = [1, 1]} : vector<8x256xf32> to vector<2x256xf32>
    %87 = arith.addf %79, %86 : vector<2x256xf32>
    %c7 = arith.constant 7 : index
    %88 = memref.load %arg6[%c7] : memref<16xf32, #tpu.memory_space<smem>>
    %89 = vector.broadcast %88 : f32 to vector<2x256xf32>
    %90 = arith.mulf %89, %9 : vector<2x256xf32>
    %91 = arith.addf %83, %90 : vector<2x256xf32>
    %c2_16 = arith.constant 2 : index
    %c0_17 = arith.constant 0 : index
    %c0_18 = arith.constant 0 : index
    %92 = vector.load %arg4[%c2_16, %c0_17, %c0_18] : memref<4x8x256xbf16, #tpu.memory_space<vmem>>, vector<1x8x256xbf16>
    %93 = vector.shape_cast %92 : vector<1x8x256xbf16> to vector<8x256xbf16>
    %94 = arith.extf %93 : vector<8x256xbf16> to vector<8x256xf32>
    %c2_19 = arith.constant 2 : index
    %c0_20 = arith.constant 0 : index
    %c0_21 = arith.constant 0 : index
    %95 = vector.load %arg5[%c2_19, %c0_20, %c0_21] : memref<4x8x256xbf16, #tpu.memory_space<vmem>>, vector<1x8x256xbf16>
    %96 = vector.shape_cast %95 : vector<1x8x256xbf16> to vector<8x256xbf16>
    %97 = arith.extf %96 : vector<8x256xbf16> to vector<8x256xf32>
    %98 = arith.mulf %94, %4 : vector<8x256xf32>
    %99 = arith.mulf %97, %5 : vector<8x256xf32>
    %100 = arith.subf %98, %99 : vector<8x256xf32>
    %101 = arith.mulf %94, %5 : vector<8x256xf32>
    %102 = arith.mulf %97, %4 : vector<8x256xf32>
    %103 = arith.addf %101, %102 : vector<8x256xf32>
    %104 = vector.extract_strided_slice %100 {offsets = [0, 0], sizes = [2, 256], strides = [1, 1]} : vector<8x256xf32> to vector<2x256xf32>
    %105 = vector.extract_strided_slice %103 {offsets = [0, 0], sizes = [2, 256], strides = [1, 1]} : vector<8x256xf32> to vector<2x256xf32>
    %c8 = arith.constant 8 : index
    %106 = memref.load %arg6[%c8] : memref<16xf32, #tpu.memory_space<smem>>
    %107 = vector.broadcast %106 : f32 to vector<2x256xf32>
    %108 = arith.mulf %107, %6 : vector<2x256xf32>
    %109 = vector.extract_strided_slice %100 {offsets = [2, 0], sizes = [2, 256], strides = [1, 1]} : vector<8x256xf32> to vector<2x256xf32>
    %110 = arith.addf %104, %109 : vector<2x256xf32>
    %111 = vector.extract_strided_slice %103 {offsets = [2, 0], sizes = [2, 256], strides = [1, 1]} : vector<8x256xf32> to vector<2x256xf32>
    %112 = arith.addf %105, %111 : vector<2x256xf32>
    %c9 = arith.constant 9 : index
    %113 = memref.load %arg6[%c9] : memref<16xf32, #tpu.memory_space<smem>>
    %114 = vector.broadcast %113 : f32 to vector<2x256xf32>
    %115 = arith.mulf %114, %7 : vector<2x256xf32>
    %116 = arith.addf %108, %115 : vector<2x256xf32>
    %117 = vector.extract_strided_slice %100 {offsets = [4, 0], sizes = [2, 256], strides = [1, 1]} : vector<8x256xf32> to vector<2x256xf32>
    %118 = arith.addf %110, %117 : vector<2x256xf32>
    %119 = vector.extract_strided_slice %103 {offsets = [4, 0], sizes = [2, 256], strides = [1, 1]} : vector<8x256xf32> to vector<2x256xf32>
    %120 = arith.addf %112, %119 : vector<2x256xf32>
    %c10 = arith.constant 10 : index
    %121 = memref.load %arg6[%c10] : memref<16xf32, #tpu.memory_space<smem>>
    %122 = vector.broadcast %121 : f32 to vector<2x256xf32>
    %123 = arith.mulf %122, %8 : vector<2x256xf32>
    %124 = arith.addf %116, %123 : vector<2x256xf32>
    %125 = vector.extract_strided_slice %100 {offsets = [6, 0], sizes = [2, 256], strides = [1, 1]} : vector<8x256xf32> to vector<2x256xf32>
    %126 = arith.addf %118, %125 : vector<2x256xf32>
    %127 = vector.extract_strided_slice %103 {offsets = [6, 0], sizes = [2, 256], strides = [1, 1]} : vector<8x256xf32> to vector<2x256xf32>
    %128 = arith.addf %120, %127 : vector<2x256xf32>
    %c11 = arith.constant 11 : index
    %129 = memref.load %arg6[%c11] : memref<16xf32, #tpu.memory_space<smem>>
    %130 = vector.broadcast %129 : f32 to vector<2x256xf32>
    %131 = arith.mulf %130, %9 : vector<2x256xf32>
    %132 = arith.addf %124, %131 : vector<2x256xf32>
    %c3_22 = arith.constant 3 : index
    %c0_23 = arith.constant 0 : index
    %c0_24 = arith.constant 0 : index
    %133 = vector.load %arg4[%c3_22, %c0_23, %c0_24] : memref<4x8x256xbf16, #tpu.memory_space<vmem>>, vector<1x8x256xbf16>
    %134 = vector.shape_cast %133 : vector<1x8x256xbf16> to vector<8x256xbf16>
    %135 = arith.extf %134 : vector<8x256xbf16> to vector<8x256xf32>
    %c3_25 = arith.constant 3 : index
    %c0_26 = arith.constant 0 : index
    %c0_27 = arith.constant 0 : index
    %136 = vector.load %arg5[%c3_25, %c0_26, %c0_27] : memref<4x8x256xbf16, #tpu.memory_space<vmem>>, vector<1x8x256xbf16>
    %137 = vector.shape_cast %136 : vector<1x8x256xbf16> to vector<8x256xbf16>
    %138 = arith.extf %137 : vector<8x256xbf16> to vector<8x256xf32>
    %139 = arith.mulf %135, %4 : vector<8x256xf32>
    %140 = arith.mulf %138, %5 : vector<8x256xf32>
    %141 = arith.subf %139, %140 : vector<8x256xf32>
    %142 = arith.mulf %135, %5 : vector<8x256xf32>
    %143 = arith.mulf %138, %4 : vector<8x256xf32>
    %144 = arith.addf %142, %143 : vector<8x256xf32>
    %145 = vector.extract_strided_slice %141 {offsets = [0, 0], sizes = [2, 256], strides = [1, 1]} : vector<8x256xf32> to vector<2x256xf32>
    %146 = vector.extract_strided_slice %144 {offsets = [0, 0], sizes = [2, 256], strides = [1, 1]} : vector<8x256xf32> to vector<2x256xf32>
    %c12 = arith.constant 12 : index
    %147 = memref.load %arg6[%c12] : memref<16xf32, #tpu.memory_space<smem>>
    %148 = vector.broadcast %147 : f32 to vector<2x256xf32>
    %149 = arith.mulf %148, %6 : vector<2x256xf32>
    %150 = vector.extract_strided_slice %141 {offsets = [2, 0], sizes = [2, 256], strides = [1, 1]} : vector<8x256xf32> to vector<2x256xf32>
    %151 = arith.addf %145, %150 : vector<2x256xf32>
    %152 = vector.extract_strided_slice %144 {offsets = [2, 0], sizes = [2, 256], strides = [1, 1]} : vector<8x256xf32> to vector<2x256xf32>
    %153 = arith.addf %146, %152 : vector<2x256xf32>
    %c13 = arith.constant 13 : index
    %154 = memref.load %arg6[%c13] : memref<16xf32, #tpu.memory_space<smem>>
    %155 = vector.broadcast %154 : f32 to vector<2x256xf32>
    %156 = arith.mulf %155, %7 : vector<2x256xf32>
    %157 = arith.addf %149, %156 : vector<2x256xf32>
    %158 = vector.extract_strided_slice %141 {offsets = [4, 0], sizes = [2, 256], strides = [1, 1]} : vector<8x256xf32> to vector<2x256xf32>
    %159 = arith.addf %151, %158 : vector<2x256xf32>
    %160 = vector.extract_strided_slice %144 {offsets = [4, 0], sizes = [2, 256], strides = [1, 1]} : vector<8x256xf32> to vector<2x256xf32>
    %161 = arith.addf %153, %160 : vector<2x256xf32>
    %c14 = arith.constant 14 : index
    %162 = memref.load %arg6[%c14] : memref<16xf32, #tpu.memory_space<smem>>
    %163 = vector.broadcast %162 : f32 to vector<2x256xf32>
    %164 = arith.mulf %163, %8 : vector<2x256xf32>
    %165 = arith.addf %157, %164 : vector<2x256xf32>
    %166 = vector.extract_strided_slice %141 {offsets = [6, 0], sizes = [2, 256], strides = [1, 1]} : vector<8x256xf32> to vector<2x256xf32>
    %167 = arith.addf %159, %166 : vector<2x256xf32>
    %168 = vector.extract_strided_slice %144 {offsets = [6, 0], sizes = [2, 256], strides = [1, 1]} : vector<8x256xf32> to vector<2x256xf32>
    %169 = arith.addf %161, %168 : vector<2x256xf32>
    %c15 = arith.constant 15 : index
    %170 = memref.load %arg6[%c15] : memref<16xf32, #tpu.memory_space<smem>>
    %171 = vector.broadcast %170 : f32 to vector<2x256xf32>
    %172 = arith.mulf %171, %9 : vector<2x256xf32>
    %173 = arith.addf %165, %172 : vector<2x256xf32>
    %174 = tpu.concatenate %44, %85, %126, %167 in 0 : vector<2x256xf32>, vector<2x256xf32>, vector<2x256xf32>, vector<2x256xf32> -> vector<8x256xf32>
    %175 = tpu.concatenate %46, %87, %128, %169 in 0 : vector<2x256xf32>, vector<2x256xf32>, vector<2x256xf32>, vector<2x256xf32> -> vector<8x256xf32>
    %176 = tpu.concatenate %50, %91, %132, %173 in 0 : vector<2x256xf32>, vector<2x256xf32>, vector<2x256xf32>, vector<2x256xf32> -> vector<8x256xf32>
    %177 = tpu.concatenate %174, %175 in 1 : vector<8x256xf32>, vector<8x256xf32> -> vector<8x512xf32>
    %178 = arith.truncf %177 : vector<8x512xf32> to vector<8x512xbf16>
    %c0_28 = arith.constant 0 : index
    %c0_29 = arith.constant 0 : index
    %179 = vector.load %arg3[%c0_28, %c0_29] : memref<512x256xbf16, #tpu.memory_space<vmem>>, vector<512x256xbf16>
    %cst_30 = arith.constant dense<0.000000e+00> : vector<8x256xf32>
    %180 = tpu.matmul %178, %179, %cst_30 {dimension_numbers = #tpu.dot_dimension_numbers<[1], [0], [0], [1], [0, 0, 1, 1], [], []>} : vector<8x512xbf16>, vector<512x256xbf16>, vector<8x256xf32> -> vector<8x256xf32>
    %181 = arith.addf %180, %176 : vector<8x256xf32>
    %cst_31 = arith.constant 5.000000e-01 : f32
    %182 = vector.broadcast %cst_31 : f32 to vector<8x256xf32>
    %183 = arith.mulf %182, %181 : vector<8x256xf32>
    %cst_32 = arith.constant 0.707106769 : f32
    %184 = vector.broadcast %cst_32 : f32 to vector<8x256xf32>
    %185 = arith.mulf %181, %184 : vector<8x256xf32>
    %cst_33 = arith.constant 0.000000e+00 : f32
    %186 = vector.broadcast %cst_33 : f32 to vector<8x256xf32>
    %187 = arith.cmpf oge, %185, %186 : vector<8x256xf32>
    %cst_34 = arith.constant 1.000000e+00 : f32
    %cst_35 = arith.constant -1.000000e+00 : f32
    %188 = vector.broadcast %cst_34 : f32 to vector<8x256xf32>
    %189 = vector.broadcast %cst_35 : f32 to vector<8x256xf32>
    %190 = arith.select %187, %188, %189 : vector<8x256xi1>, vector<8x256xf32>
    %191 = math.absf %185 : vector<8x256xf32>
    %cst_36 = arith.constant 0.327591091 : f32
    %192 = vector.broadcast %cst_36 : f32 to vector<8x256xf32>
    %193 = arith.mulf %192, %191 : vector<8x256xf32>
    %cst_37 = arith.constant 1.000000e+00 : f32
    %194 = vector.broadcast %cst_37 : f32 to vector<8x256xf32>
    %195 = arith.addf %194, %193 : vector<8x256xf32>
    %cst_38 = arith.constant 1.000000e+00 : f32
    %196 = vector.broadcast %cst_38 : f32 to vector<8x256xf32>
    %197 = arith.divf %196, %195 : vector<8x256xf32>
    %cst_39 = arith.constant 1.06140542 : f32
    %198 = vector.broadcast %cst_39 : f32 to vector<8x256xf32>
    %199 = arith.mulf %198, %197 : vector<8x256xf32>
    %cst_40 = arith.constant -1.45315206 : f32
    %200 = vector.broadcast %cst_40 : f32 to vector<8x256xf32>
    %201 = arith.addf %199, %200 : vector<8x256xf32>
    %202 = arith.mulf %201, %197 : vector<8x256xf32>
    %cst_41 = arith.constant 1.42141378 : f32
    %203 = vector.broadcast %cst_41 : f32 to vector<8x256xf32>
    %204 = arith.addf %202, %203 : vector<8x256xf32>
    %205 = arith.mulf %204, %197 : vector<8x256xf32>
    %cst_42 = arith.constant -0.284496725 : f32
    %206 = vector.broadcast %cst_42 : f32 to vector<8x256xf32>
    %207 = arith.addf %205, %206 : vector<8x256xf32>
    %208 = arith.mulf %207, %197 : vector<8x256xf32>
    %cst_43 = arith.constant 0.254829586 : f32
    %209 = vector.broadcast %cst_43 : f32 to vector<8x256xf32>
    %210 = arith.addf %208, %209 : vector<8x256xf32>
    %211 = arith.mulf %210, %197 : vector<8x256xf32>
    %cst_44 = arith.constant 0.000000e+00 : f32
    %212 = vector.broadcast %cst_44 : f32 to vector<8x256xf32>
    %213 = arith.subf %212, %191 : vector<8x256xf32>
    %214 = arith.mulf %213, %191 : vector<8x256xf32>
    %215 = math.exp %214 : vector<8x256xf32>
    %216 = arith.mulf %211, %215 : vector<8x256xf32>
    %cst_45 = arith.constant 1.000000e+00 : f32
    %217 = vector.broadcast %cst_45 : f32 to vector<8x256xf32>
    %218 = arith.subf %217, %216 : vector<8x256xf32>
    %219 = arith.mulf %190, %218 : vector<8x256xf32>
    %cst_46 = arith.constant 1.000000e+00 : f32
    %220 = vector.broadcast %cst_46 : f32 to vector<8x256xf32>
    %221 = arith.addf %220, %219 : vector<8x256xf32>
    %222 = arith.mulf %183, %221 : vector<8x256xf32>
    %223 = arith.addf %222, %0 : vector<8x256xf32>
    %c0_47 = arith.constant 0 : index
    %c0_48 = arith.constant 0 : index
    %224 = vector.load %arg7[%c0_47, %c0_48] : memref<8x256xf32, #tpu.memory_space<vmem>>, vector<8x256xf32>
    tpu.vector_store %arg7[%c0_47, %c0_48], %223 {strides = array<i32>} : memref<8x256xf32, #tpu.memory_space<vmem>>, vector<8x256xf32>,
    return
  }
  func.func @transform_0(%arg0: i32) -> (i32, i32) {
    %c0_i32 = arith.constant 0 : i32
    %c0_i32_0 = arith.constant 0 : i32
    %c0_i32_1 = arith.constant 0 : i32
    return %c0_i32, %c0_i32_0 : i32, i32
  }
  func.func @transform_1(%arg0: i32) -> (i32, i32) {
    %c0_i32 = arith.constant 0 : i32
    %c0_i32_0 = arith.constant 0 : i32
    %c0_i32_1 = arith.constant 0 : i32
    return %c0_i32, %c0_i32_0 : i32, i32
  }
  func.func @transform_2(%arg0: i32) -> (i32, i32) {
    %c0_i32 = arith.constant 0 : i32
    %c0_i32_0 = arith.constant 0 : i32
    %c0_i32_1 = arith.constant 0 : i32
    return %c0_i32, %c0_i32_0 : i32, i32
  }
  func.func @transform_3(%arg0: i32) -> (i32, i32, i32) {
    %c0_i32 = arith.constant 0 : i32
    %c0_i32_0 = arith.constant 0 : i32
    %c0_i32_1 = arith.constant 0 : i32
    %c0_i32_2 = arith.constant 0 : i32
    return %c0_i32, %c0_i32_0, %c0_i32_1 : i32, i32, i32
  }
  func.func @transform_4(%arg0: i32) -> (i32, i32, i32) {
    %c0_i32 = arith.constant 0 : i32
    %c0_i32_0 = arith.constant 0 : i32
    %c0_i32_1 = arith.constant 0 : i32
    %c0_i32_2 = arith.constant 0 : i32
    return %c0_i32, %c0_i32_0, %c0_i32_1 : i32, i32, i32
  }
  func.func @transform_5(%arg0: i32) -> i32 {
    %c0_i32 = arith.constant 0 : i32
    %c0_i32_0 = arith.constant 0 : i32
    return %c0_i32 : i32
  }
  func.func @transform_6(%arg0: i32) -> (i32, i32) {
    %c0_i32 = arith.constant 0 : i32
    %c0_i32_0 = arith.constant 0 : i32
    %c0_i32_1 = arith.constant 0 : i32
    return %c0_i32, %c0_i32_0 : i32, i32
  }
}

</mosaic_0001>

<llo_original>
// kernel: tpu_custom_call.1
$region0: #{tpu_custom_call.1}
  #allocation0 [shape = 'u32[]', space=smem, size = 0x4, offset = 0x4, fixed_abs, tag = 'smem constant byte address 0x4 - core index']
  #allocation1 [shape = 'u32[144,128]{1,0:T(1,128)}', space=vmem, size = 0x12000, scoped, tag = 'internal scratch']
  %s0 = inlined_call_operand.hbm [shape: f32[8,256], index: 0, kind: input, shape index: {}]
  %s1 = inlined_call_operand.hbm [shape: bf16[256,512], index: 1, kind: input, shape index: {}]
  %s2 = inlined_call_operand.hbm [shape: bf16[512,256], index: 2, kind: input, shape index: {}]
  %s3 = inlined_call_operand.hbm [shape: bf16[4,8,256], index: 3, kind: input, shape index: {}]
  %s4 = inlined_call_operand.hbm [shape: bf16[4,8,256], index: 4, kind: input, shape index: {}]
  %s5 = inlined_call_operand.vmem [shape: f32[16], index: 5, kind: input, shape index: {}]
  %s6 = inlined_call_operand.hbm [shape: f32[8,256], index: 6, kind: output, shape index: {}]
  %s7 = sld [smem:[#allocation0]]
  $region58: #{tpu_custom_call.1} parent=0
    _
  %s9 = ssub.s32 1, %s7
  %s10 = scalar_select 0, %s9, %s7
  $region1: #{tpu_custom_call.1} parent=0
    #allocation2 [shape = 'u8[8192]{0}', space=vmem, size = 0x2000, scoped, tag = 'input window, operand 0, single buffered']
    #allocation3 [shape = 's32[1]{0}', space=sflag, size = 0x4, scoped, tag = 'scoped memory for tpu_custom_call.1']
    #allocation4 [shape = 's32[1]{0}', space=sflag, size = 0x4, scoped, tag = 'scoped memory for tpu_custom_call.1']
    #allocation5 [shape = 's32[1]{0}', space=sflag, size = 0x4, scoped, tag = 'scoped memory for tpu_custom_call.1']
    #allocation6 [shape = 'u8[262144]{0}', space=vmem, size = 0x40000, scoped, tag = 'input window, operand 1, single buffered']
    #allocation7 [shape = 's32[1]{0}', space=sflag, size = 0x4, scoped, tag = 'scoped memory for tpu_custom_call.1']
    #allocation8 [shape = 'u8[262144]{0}', space=vmem, size = 0x40000, scoped, tag = 'input window, operand 2, single buffered']
    #allocation9 [shape = 'u8[16384]{0}', space=vmem, size = 0x4000, scoped, tag = 'input window, operand 3, single buffered']
    #allocation10 [shape = 's32[1]{0}', space=sflag, size = 0x4, scoped, tag = 'scoped memory for tpu_custom_call.1']
    #allocation11 [shape = 'u8[16384]{0}', space=vmem, size = 0x4000, scoped, tag = 'input window, operand 4, single buffered']
    #allocation12 [shape = 'u8[512]{0}', space=smem, size = 0x200, scoped, tag = 'input window, operand 5, single buffered']
    #allocation13 [shape = 'u8[8192]{0}', space=vmem, size = 0x2000, scoped, tag = 'output window, operand 0, single buffered']
    %11 = vsyncpa [#allocation3], 0
    %12 = vsyncpa [#allocation7], 0
    %13 = vsyncpa [#allocation10], 0
    %14 = vsyncpa [#allocation5], 0
    %15 = vsyncpa [#allocation4], 0
    // Predicated region
    $region2: #{tpu_custom_call.1} parent=1 // pred_check
      _
    $region3: #{tpu_custom_call.1} parent=1 // pred_check_branch
      %17 = sbr.rel (0) target = $region5
    $region4: #{tpu_custom_call.1} parent=1 // pred_region
      %s19 = ssub.s32 256, 256
      %20 = vsyncadd [#allocation3], %s19
      %s22 = sshll.u32 [#allocation2], 4
      %s23 = int_to_ptr.vmem [resolvable:$true] %s22
      %25 = dma.hbm_to_vmem [thread:$0]  %s0, 256, %s23, [#allocation3]
    $region5: #{tpu_custom_call.1} parent=1 // pred_fallthru
      _
    // Predicated region
    $region6: #{tpu_custom_call.1} parent=1 // pred_check
      _
    $region7: #{tpu_custom_call.1} parent=1 // pred_check_branch
      %27 = sbr.rel (0) target = $region9
    $region8: #{tpu_custom_call.1} parent=1 // pred_region
      %s29 = ssub.s32 8192, 8192
      %30 = vsyncadd [#allocation7], %s29
      %s31 = sshll.u32 [#allocation6], 4
      %s32 = int_to_ptr.vmem [resolvable:$true] %s31
      %37 = dma.hbm_to_vmem [thread:$0]  %s1, 8192, %s32, [#allocation7], 256, 256, 16
    $region9: #{tpu_custom_call.1} parent=1 // pred_fallthru
      _
    // Predicated region
    $region10: #{tpu_custom_call.1} parent=1 // pred_check
      _
    $region11: #{tpu_custom_call.1} parent=1 // pred_check_branch
      %39 = sbr.rel (0) target = $region13
    $region12: #{tpu_custom_call.1} parent=1 // pred_region
      %s41 = ssub.s32 8192, 8192
      %42 = vsyncadd [#allocation7], %s41
      %s43 = sshll.u32 [#allocation8], 4
      %s44 = int_to_ptr.vmem [resolvable:$true] %s43
      %49 = dma.hbm_to_vmem [thread:$0]  %s2, 8192, %s44, [#allocation7], 128, 128, 8
    $region13: #{tpu_custom_call.1} parent=1 // pred_fallthru
      _
    // Predicated region
    $region14: #{tpu_custom_call.1} parent=1 // pred_check
      _
    $region15: #{tpu_custom_call.1} parent=1 // pred_check_branch
      %51 = sbr.rel (0) target = $region17
    $region16: #{tpu_custom_call.1} parent=1 // pred_region
      %s53 = ssub.s32 512, 512
      %54 = vsyncadd [#allocation10], %s53
      %s55 = sshll.u32 [#allocation9], 4
      %s56 = int_to_ptr.vmem [resolvable:$true] %s55
      %61 = dma.hbm_to_vmem [thread:$0]  %s3, 512, %s56, [#allocation10], 128, 128, 8
    $region17: #{tpu_custom_call.1} parent=1 // pred_fallthru
      _
    // Predicated region
    $region18: #{tpu_custom_call.1} parent=1 // pred_check
      _
    $region19: #{tpu_custom_call.1} parent=1 // pred_check_branch
      %63 = sbr.rel (0) target = $region21
    $region20: #{tpu_custom_call.1} parent=1 // pred_region
      %s65 = ssub.s32 512, 512
      %66 = vsyncadd [#allocation10], %s65
      %s67 = sshll.u32 [#allocation11], 4
      %s68 = int_to_ptr.vmem [resolvable:$true] %s67
      %73 = dma.hbm_to_vmem [thread:$0]  %s4, 512, %s68, [#allocation10], 128, 128, 8
    $region21: #{tpu_custom_call.1} parent=1 // pred_fallthru
      _
    // Predicated region
    $region22: #{tpu_custom_call.1} parent=1 // pred_check
      _
    $region23: #{tpu_custom_call.1} parent=1 // pred_check_branch
      %75 = sbr.rel (0) target = $region25
    $region24: #{tpu_custom_call.1} parent=1 // pred_region
      %s77 = ssub.s32 16, 16
      %78 = vsyncadd [#allocation5], %s77
      %s80 = sshll.u32 %s5, 4
      %s81 = int_to_ptr.vmem [resolvable:$true] %s80
      %83 = dma.vmem_to_smem %s81, 16, [#allocation12], [#allocation5]
    $region25: #{tpu_custom_call.1} parent=1 // pred_fallthru
      _
    // Predicated region
    $region26: #{tpu_custom_call.1} parent=1 // pred_check
      _
    $region27: #{tpu_custom_call.1} parent=1 // pred_check_branch
      %85 = sbr.rel (0) target = $region29
    $region28: #{tpu_custom_call.1} parent=1 // pred_region
      %86 = dma.done [#allocation3], 256
    $region29: #{tpu_custom_call.1} parent=1 // pred_fallthru
      _
    // Predicated region
    $region30: #{tpu_custom_call.1} parent=1 // pred_check
      _
    $region31: #{tpu_custom_call.1} parent=1 // pred_check_branch
      %88 = sbr.rel (0) target = $region33
    $region32: #{tpu_custom_call.1} parent=1 // pred_region
      %89 = dma.done [#allocation7], 8192
    $region33: #{tpu_custom_call.1} parent=1 // pred_fallthru
      _
    // Predicated region
    $region34: #{tpu_custom_call.1} parent=1 // pred_check
      _
    $region35: #{tpu_custom_call.1} parent=1 // pred_check_branch
      %91 = sbr.rel (0) target = $region37
    $region36: #{tpu_custom_call.1} parent=1 // pred_region
      %92 = dma.done [#allocation7], 8192
    $region37: #{tpu_custom_call.1} parent=1 // pred_fallthru
      _
    // Predicated region
    $region38: #{tpu_custom_call.1} parent=1 // pred_check
      _
    $region39: #{tpu_custom_call.1} parent=1 // pred_check_branch
      %94 = sbr.rel (0) target = $region41
    $region40: #{tpu_custom_call.1} parent=1 // pred_region
      %95 = dma.done [#allocation10], 512
    $region41: #{tpu_custom_call.1} parent=1 // pred_fallthru
      _
    // Predicated region
    $region42: #{tpu_custom_call.1} parent=1 // pred_check
      _
    $region43: #{tpu_custom_call.1} parent=1 // pred_check_branch
      %97 = sbr.rel (0) target = $region45
    $region44: #{tpu_custom_call.1} parent=1 // pred_region
      %98 = dma.done [#allocation10], 512
    $region45: #{tpu_custom_call.1} parent=1 // pred_fallthru
      _
    // Predicated region
    $region46: #{tpu_custom_call.1} parent=1 // pred_check
      _
    $region47: #{tpu_custom_call.1} parent=1 // pred_check_branch
      %100 = sbr.rel (0) target = $region49
    $region48: #{tpu_custom_call.1} parent=1 // pred_region
      %101 = dma.done [#allocation5], 16
    $region49: #{tpu_custom_call.1} parent=1 // pred_fallthru
      _
    %102 = sfence
    %v103 = vld [vmem:[#allocation2] sm:$0xff]
    %v104 = vld [vmem:[#allocation2 + $0x8] sm:$0xff]
    %v105 = vpack.c.bf16 %v103, %v103
    %v106 = vpack.c.bf16 %v104, %v104
    %v107 = vld [vmem:[#allocation6] sm:$0xff]
    %v108 = vld [vmem:[#allocation6 + $0x8] sm:$0xff]
    %v109 = vld [vmem:[#allocation6 + $0x10] sm:$0xff]
    %v110 = vld [vmem:[#allocation6 + $0x18] sm:$0xff]
    %v111 = vld [vmem:[#allocation6 + $0x20] sm:$0xff]
    %v112 = vld [vmem:[#allocation6 + $0x28] sm:$0xff]
    %v113 = vld [vmem:[#allocation6 + $0x30] sm:$0xff]
    %v114 = vld [vmem:[#allocation6 + $0x38] sm:$0xff]
    %v115 = vld [vmem:[#allocation6 + $0x40] sm:$0xff]
    %v116 = vld [vmem:[#allocation6 + $0x48] sm:$0xff]
    %v117 = vld [vmem:[#allocation6 + $0x50] sm:$0xff]
    %v118 = vld [vmem:[#allocation6 + $0x58] sm:$0xff]
    %v119 = vld [vmem:[#allocation6 + $0x60] sm:$0xff]
    %v120 = vld [vmem:[#allocation6 + $0x68] sm:$0xff]
    %v121 = vld [vmem:[#allocation6 + $0x70] sm:$0xff]
    %v122 = vld [vmem:[#allocation6 + $0x78] sm:$0xff]
    %v123 = vld [vmem:[#allocation6 + $0x80] sm:$0xff]
    %v124 = vld [vmem:[#allocation6 + $0x88] sm:$0xff]
    %v125 = vld [vmem:[#allocation6 + $0x90] sm:$0xff]
    %v126 = vld [vmem:[#allocation6 + $0x98] sm:$0xff]
    %v127 = vld [vmem:[#allocation6 + $0xa0] sm:$0xff]
    %v128 = vld [vmem:[#allocation6 + $0xa8] sm:$0xff]
    %v129 = vld [vmem:[#allocation6 + $0xb0] sm:$0xff]
    %v130 = vld [vmem:[#allocation6 + $0xb8] sm:$0xff]
    %v131 = vld [vmem:[#allocation6 + $0xc0] sm:$0xff]
    %v132 = vld [vmem:[#allocation6 + $0xc8] sm:$0xff]
    %v133 = vld [vmem:[#allocation6 + $0xd0] sm:$0xff]
    %v134 = vld [vmem:[#allocation6 + $0xd8] sm:$0xff]
    %v135 = vld [vmem:[#allocation6 + $0xe0] sm:$0xff]
    %v136 = vld [vmem:[#allocation6 + $0xe8] sm:$0xff]
    %v137 = vld [vmem:[#allocation6 + $0xf0] sm:$0xff]
    %v138 = vld [vmem:[#allocation6 + $0xf8] sm:$0xff]
    %v139 = vld [vmem:[#allocation6 + $0x100] sm:$0xff]
    %v140 = vld [vmem:[#allocation6 + $0x108] sm:$0xff]
    %v141 = vld [vmem:[#allocation6 + $0x110] sm:$0xff]
    %v142 = vld [vmem:[#allocation6 + $0x118] sm:$0xff]
    %v143 = vld [vmem:[#allocation6 + $0x120] sm:$0xff]
    %v144 = vld [vmem:[#allocation6 + $0x128] sm:$0xff]
    %v145 = vld [vmem:[#allocation6 + $0x130] sm:$0xff]
    %v146 = vld [vmem:[#allocation6 + $0x138] sm:$0xff]
    %v147 = vld [vmem:[#allocation6 + $0x140] sm:$0xff]
    %v148 = vld [vmem:[#allocation6 + $0x148] sm:$0xff]
    %v149 = vld [vmem:[#allocation6 + $0x150] sm:$0xff]
    %v150 = vld [vmem:[#allocation6 + $0x158] sm:$0xff]
    %v151 = vld [vmem:[#allocation6 + $0x160] sm:$0xff]
    %v152 = vld [vmem:[#allocation6 + $0x168] sm:$0xff]
    %v153 = vld [vmem:[#allocation6 + $0x170] sm:$0xff]
    %v154 = vld [vmem:[#allocation6 + $0x178] sm:$0xff]
    %v155 = vld [vmem:[#allocation6 + $0x180] sm:$0xff]
    %v156 = vld [vmem:[#allocation6 + $0x188] sm:$0xff]
    %v157 = vld [vmem:[#allocation6 + $0x190] sm:$0xff]
    %v158 = vld [vmem:[#allocation6 + $0x198] sm:$0xff]
    %v159 = vld [vmem:[#allocation6 + $0x1a0] sm:$0xff]
    %v160 = vld [vmem:[#allocation6 + $0x1a8] sm:$0xff]
    %v161 = vld [vmem:[#allocation6 + $0x1b0] sm:$0xff]
    %v162 = vld [vmem:[#allocation6 + $0x1b8] sm:$0xff]
    %v163 = vld [vmem:[#allocation6 + $0x1c0] sm:$0xff]
    %v164 = vld [vmem:[#allocation6 + $0x1c8] sm:$0xff]
    %v165 = vld [vmem:[#allocation6 + $0x1d0] sm:$0xff]
    %v166 = vld [vmem:[#allocation6 + $0x1d8] sm:$0xff]
    %v167 = vld [vmem:[#allocation6 + $0x1e0] sm:$0xff]
    %v168 = vld [vmem:[#allocation6 + $0x1e8] sm:$0xff]
    %v169 = vld [vmem:[#allocation6 + $0x1f0] sm:$0xff]
    %v170 = vld [vmem:[#allocation6 + $0x1f8] sm:$0xff]
    %v235 = vunpack.c.l.b16 %v107
    %v236 = vunpack.c.h.b16 %v107
    %v237 = vunpack.c.l.b16 %v108
    %v238 = vunpack.c.h.b16 %v108
    %v239 = vunpack.c.l.b16 %v109
    %v240 = vunpack.c.h.b16 %v109
    %v241 = vunpack.c.l.b16 %v110
    %v242 = vunpack.c.h.b16 %v110
    %v243 = vunpack.c.l.b16 %v111
    %v244 = vunpack.c.h.b16 %v111
    %v245 = vunpack.c.l.b16 %v112
    %v246 = vunpack.c.h.b16 %v112
    %v247 = vunpack.c.l.b16 %v113
    %v248 = vunpack.c.h.b16 %v113
    %v249 = vunpack.c.l.b16 %v114
    %v250 = vunpack.c.h.b16 %v114
    %v251 = vunpack.c.l.b16 %v115
    %v252 = vunpack.c.h.b16 %v115
    %v253 = vunpack.c.l.b16 %v116
    %v254 = vunpack.c.h.b16 %v116
    %v255 = vunpack.c.l.b16 %v117
    %v256 = vunpack.c.h.b16 %v117
    %v257 = vunpack.c.l.b16 %v118
    %v258 = vunpack.c.h.b16 %v118
    %v259 = vunpack.c.l.b16 %v119
    %v260 = vunpack.c.h.b16 %v119
    %v261 = vunpack.c.l.b16 %v120
    %v262 = vunpack.c.h.b16 %v120
    %v263 = vunpack.c.l.b16 %v121
    %v264 = vunpack.c.h.b16 %v121
    %v265 = vunpack.c.l.b16 %v122
    %v266 = vunpack.c.h.b16 %v122
    %v267 = vunpack.c.l.b16 %v123
    %v268 = vunpack.c.h.b16 %v123
    %v269 = vunpack.c.l.b16 %v124
    %v270 = vunpack.c.h.b16 %v124
    %v271 = vunpack.c.l.b16 %v125
    %v272 = vunpack.c.h.b16 %v125
    %v273 = vunpack.c.l.b16 %v126
    %v274 = vunpack.c.h.b16 %v126
    %v275 = vunpack.c.l.b16 %v127
    %v276 = vunpack.c.h.b16 %v127
    %v277 = vunpack.c.l.b16 %v128
    %v278 = vunpack.c.h.b16 %v128
    %v279 = vunpack.c.l.b16 %v129
    %v280 = vunpack.c.h.b16 %v129
    %v281 = vunpack.c.l.b16 %v130
    %v282 = vunpack.c.h.b16 %v130
    %v283 = vunpack.c.l.b16 %v131
    %v284 = vunpack.c.h.b16 %v131
    %v285 = vunpack.c.l.b16 %v132
    %v286 = vunpack.c.h.b16 %v132
    %v287 = vunpack.c.l.b16 %v133
    %v288 = vunpack.c.h.b16 %v133
    %v289 = vunpack.c.l.b16 %v134
    %v290 = vunpack.c.h.b16 %v134
    %v291 = vunpack.c.l.b16 %v135
    %v292 = vunpack.c.h.b16 %v135
    %v293 = vunpack.c.l.b16 %v136
    %v294 = vunpack.c.h.b16 %v136
    %v295 = vunpack.c.l.b16 %v137
    %v296 = vunpack.c.h.b16 %v137
    %v297 = vunpack.c.l.b16 %v138
    %v298 = vunpack.c.h.b16 %v138
    %v299 = vunpack.c.l.b16 %v139
    %v300 = vunpack.c.h.b16 %v139
    %v301 = vunpack.c.l.b16 %v140
    %v302 = vunpack.c.h.b16 %v140
    %v303 = vunpack.c.l.b16 %v141
    %v304 = vunpack.c.h.b16 %v141
    %v305 = vunpack.c.l.b16 %v142
    %v306 = vunpack.c.h.b16 %v142
    %v307 = vunpack.c.l.b16 %v143
    %v308 = vunpack.c.h.b16 %v143
    %v309 = vunpack.c.l.b16 %v144
    %v310 = vunpack.c.h.b16 %v144
    %v311 = vunpack.c.l.b16 %v145
    %v312 = vunpack.c.h.b16 %v145
    %v313 = vunpack.c.l.b16 %v146
    %v314 = vunpack.c.h.b16 %v146
    %v315 = vunpack.c.l.b16 %v147
    %v316 = vunpack.c.h.b16 %v147
    %v317 = vunpack.c.l.b16 %v148
    %v318 = vunpack.c.h.b16 %v148
    %v319 = vunpack.c.l.b16 %v149
    %v320 = vunpack.c.h.b16 %v149
    %v321 = vunpack.c.l.b16 %v150
    %v322 = vunpack.c.h.b16 %v150
    %v323 = vunpack.c.l.b16 %v151
    %v324 = vunpack.c.h.b16 %v151
    %v325 = vunpack.c.l.b16 %v152
    %v326 = vunpack.c.h.b16 %v152
    %v327 = vunpack.c.l.b16 %v153
    %v328 = vunpack.c.h.b16 %v153
    %v329 = vunpack.c.l.b16 %v154
    %v330 = vunpack.c.h.b16 %v154
    %v331 = vunpack.c.l.b16 %v155
    %v332 = vunpack.c.h.b16 %v155
    %v333 = vunpack.c.l.b16 %v156
    %v334 = vunpack.c.h.b16 %v156
    %v335 = vunpack.c.l.b16 %v157
    %v336 = vunpack.c.h.b16 %v157
    %v337 = vunpack.c.l.b16 %v158
    %v338 = vunpack.c.h.b16 %v158
    %v339 = vunpack.c.l.b16 %v159
    %v340 = vunpack.c.h.b16 %v159
    %v341 = vunpack.c.l.b16 %v160
    %v342 = vunpack.c.h.b16 %v160
    %v343 = vunpack.c.l.b16 %v161
    %v344 = vunpack.c.h.b16 %v161
    %v345 = vunpack.c.l.b16 %v162
    %v346 = vunpack.c.h.b16 %v162
    %v347 = vunpack.c.l.b16 %v163
    %v348 = vunpack.c.h.b16 %v163
    %v349 = vunpack.c.l.b16 %v164
    %v350 = vunpack.c.h.b16 %v164
    %v351 = vunpack.c.l.b16 %v165
    %v352 = vunpack.c.h.b16 %v165
    %v353 = vunpack.c.l.b16 %v166
    %v354 = vunpack.c.h.b16 %v166
    %v355 = vunpack.c.l.b16 %v167
    %v356 = vunpack.c.h.b16 %v167
    %v357 = vunpack.c.l.b16 %v168
    %v358 = vunpack.c.h.b16 %v168
    %v359 = vunpack.c.l.b16 %v169
    %v360 = vunpack.c.h.b16 %v169
    %v361 = vunpack.c.l.b16 %v170
    %v362 = vunpack.c.h.b16 %v170
    %v363 = vpack.c.b16 %v239, %v235
    %v364 = vpack.c.b16 %v240, %v236
    %v365 = vpack.c.b16 %v241, %v237
    %v366 = vpack.c.b16 %v242, %v238
    %v367 = vpack.c.b16 %v247, %v243
    %v368 = vpack.c.b16 %v248, %v244
    %v369 = vpack.c.b16 %v249, %v245
    %v370 = vpack.c.b16 %v250, %v246
    %v371 = vpack.c.b16 %v255, %v251
    %v372 = vpack.c.b16 %v256, %v252
    %v373 = vpack.c.b16 %v257, %v253
    %v374 = vpack.c.b16 %v258, %v254
    %v375 = vpack.c.b16 %v263, %v259
    %v376 = vpack.c.b16 %v264, %v260
    %v377 = vpack.c.b16 %v265, %v261
    %v378 = vpack.c.b16 %v266, %v262
    %v379 = vpack.c.b16 %v271, %v267
    %v380 = vpack.c.b16 %v272, %v268
    %v381 = vpack.c.b16 %v273, %v269
    %v382 = vpack.c.b16 %v274, %v270
    %v383 = vpack.c.b16 %v279, %v275
    %v384 = vpack.c.b16 %v280, %v276
    %v385 = vpack.c.b16 %v281, %v277
    %v386 = vpack.c.b16 %v282, %v278
    %v387 = vpack.c.b16 %v287, %v283
    %v388 = vpack.c.b16 %v288, %v284
    %v389 = vpack.c.b16 %v289, %v285
    %v390 = vpack.c.b16 %v290, %v286
    %v391 = vpack.c.b16 %v295, %v291
    %v392 = vpack.c.b16 %v296, %v292
    %v393 = vpack.c.b16 %v297, %v293
    %v394 = vpack.c.b16 %v298, %v294
    %v395 = vpack.c.b16 %v303, %v299
    %v396 = vpack.c.b16 %v304, %v300
    %v397 = vpack.c.b16 %v305, %v301
    %v398 = vpack.c.b16 %v306, %v302
    %v399 = vpack.c.b16 %v311, %v307
    %v400 = vpack.c.b16 %v312, %v308
    %v401 = vpack.c.b16 %v313, %v309
    %v402 = vpack.c.b16 %v314, %v310
    %v403 = vpack.c.b16 %v319, %v315
    %v404 = vpack.c.b16 %v320, %v316
    %v405 = vpack.c.b16 %v321, %v317
    %v406 = vpack.c.b16 %v322, %v318
    %v407 = vpack.c.b16 %v327, %v323
    %v408 = vpack.c.b16 %v328, %v324
    %v409 = vpack.c.b16 %v329, %v325
    %v410 = vpack.c.b16 %v330, %v326
    %v411 = vpack.c.b16 %v335, %v331
    %v412 = vpack.c.b16 %v336, %v332
    %v413 = vpack.c.b16 %v337, %v333
    %v414 = vpack.c.b16 %v338, %v334
    %v415 = vpack.c.b16 %v343, %v339
    %v416 = vpack.c.b16 %v344, %v340
    %v417 = vpack.c.b16 %v345, %v341
    %v418 = vpack.c.b16 %v346, %v342
    %v419 = vpack.c.b16 %v351, %v347
    %v420 = vpack.c.b16 %v352, %v348
    %v421 = vpack.c.b16 %v353, %v349
    %v422 = vpack.c.b16 %v354, %v350
    %v423 = vpack.c.b16 %v359, %v355
    %v424 = vpack.c.b16 %v360, %v356
    %v425 = vpack.c.b16 %v361, %v357
    %v426 = vpack.c.b16 %v362, %v358
    %491 = vmatprep.subr.bf16.mxu0 %v364
    %492 = vmatpush1.bf16.msra.mxu0 %v363
    %493 = vmatprep.subr.bf16.mxu0 %v368
    %494 = vmatpush1.bf16.msra.mxu0 %v367
    %495 = vmatprep.subr.bf16.mxu0 %v372
    %496 = vmatpush1.bf16.msra.mxu0 %v371
    %497 = vmatprep.subr.bf16.mxu0 %v376
    %498 = vmatpush1.bf16.msra.mxu0 %v375
    %499 = vmatprep.subr.bf16.mxu0 %v380
    %500 = vmatpush1.bf16.msra.mxu0 %v379
    %501 = vmatprep.subr.bf16.mxu0 %v384
    %502 = vmatpush1.bf16.msra.mxu0 %v383
    %503 = vmatprep.subr.bf16.mxu0 %v388
    %504 = vmatpush1.bf16.msra.mxu0 %v387
    %505 = vmatprep.subr.bf16.mxu0 %v392
    %506 = vmatpush1.bf16.msra.mxu0 %v391
    %507 = vmatprep.subr.bf16.mxu0 %v396
    %508 = vmatpush1.bf16.msra.mxu0 %v395
    %509 = vmatprep.subr.bf16.mxu0 %v400
    %510 = vmatpush1.bf16.msra.mxu0 %v399
    %511 = vmatprep.subr.bf16.mxu0 %v404
    %512 = vmatpush1.bf16.msra.mxu0 %v403
    %513 = vmatprep.subr.bf16.mxu0 %v408
    %514 = vmatpush1.bf16.msra.mxu0 %v407
    %515 = vmatprep.subr.bf16.mxu0 %v412
    %516 = vmatpush1.bf16.msra.mxu0 %v411
    %517 = vmatprep.subr.bf16.mxu0 %v416
    %518 = vmatpush1.bf16.msra.mxu0 %v415
    %519 = vmatprep.subr.bf16.mxu0 %v420
    %520 = vmatpush1.bf16.msra.mxu0 %v419
    %521 = vmatprep.subr.bf16.mxu0 %v424
    %522 = vmatpush1.bf16.msra.mxu0 %v423
    %523 = vmatprep.mubr.bf16.mxu0 %v106
    %524 = vmatmul.mubr.bf16.gmra.mrb[0].mxu0 %v105
    %v525 = vpop.f32.mrb[0].mxu0
    %v526 = vadd.f32 0.0, %v525
    %v527 = vpop.f32.mrb[0].mxu0
    %v528 = vadd.f32 0.0, %v527
    %v529 = vpop.f32.mrb[0].mxu0
    %v530 = vpop.f32.mrb[0].mxu0
    %531 = vdwg.mxu0
    %532 = vmatprep.subr.bf16.mxu0 %v366
    %533 = vmatpush1.bf16.msra.mxu0 %v365
    %534 = vmatprep.subr.bf16.mxu0 %v370
    %535 = vmatpush1.bf16.msra.mxu0 %v369
    %536 = vmatprep.subr.bf16.mxu0 %v374
    %537 = vmatpush1.bf16.msra.mxu0 %v373
    %538 = vmatprep.subr.bf16.mxu0 %v378
    %539 = vmatpush1.bf16.msra.mxu0 %v377
    %540 = vmatprep.subr.bf16.mxu0 %v382
    %541 = vmatpush1.bf16.msra.mxu0 %v381
    %542 = vmatprep.subr.bf16.mxu0 %v386
    %543 = vmatpush1.bf16.msra.mxu0 %v385
    %544 = vmatprep.subr.bf16.mxu0 %v390
    %545 = vmatpush1.bf16.msra.mxu0 %v389
    %546 = vmatprep.subr.bf16.mxu0 %v394
    %547 = vmatpush1.bf16.msra.mxu0 %v393
    %548 = vmatprep.subr.bf16.mxu0 %v398
    %549 = vmatpush1.bf16.msra.mxu0 %v397
    %550 = vmatprep.subr.bf16.mxu0 %v402
    %551 = vmatpush1.bf16.msra.mxu0 %v401
    %552 = vmatprep.subr.bf16.mxu0 %v406
    %553 = vmatpush1.bf16.msra.mxu0 %v405
    %554 = vmatprep.subr.bf16.mxu0 %v410
    %555 = vmatpush1.bf16.msra.mxu0 %v409
    %556 = vmatprep.subr.bf16.mxu0 %v414
    %557 = vmatpush1.bf16.msra.mxu0 %v413
    %558 = vmatprep.subr.bf16.mxu0 %v418
    %559 = vmatpush1.bf16.msra.mxu0 %v417
    %560 = vmatprep.subr.bf16.mxu0 %v422
    %561 = vmatpush1.bf16.msra.mxu0 %v421
    %562 = vmatprep.subr.bf16.mxu0 %v426
    %563 = vmatpush1.bf16.msra.mxu0 %v425
    %564 = vmatprep.mubr.bf16.mxu0 %v106
    %565 = vmatmul.mubr.bf16.gmra.mrb[0].mxu0 %v105
    %v566 = vpop.f32.mrb[0].mxu0
    %v567 = vadd.f32 0.0, %v566
    %v568 = vpop.f32.mrb[0].mxu0
    %v569 = vadd.f32 0.0, %v568
    %v570 = vpop.f32.mrb[0].mxu0
    %v571 = vpop.f32.mrb[0].mxu0
    %572 = vdwg.mxu0
    %v573 = vld [vmem:[#allocation9] sm:$0xff]
    %v574 = vunpack.c.l.bf16 %v573
    %v575 = vunpack.c.h.bf16 %v573
    %v576 = vld [vmem:[#allocation11] sm:$0xff]
    %v577 = vunpack.c.l.bf16 %v576
    %v578 = vunpack.c.h.bf16 %v576
    %v579 = vmul.f32 %v574, %v526
    %v580 = vmul.f32 %v575, %v528
    %v581 = vmul.f32 %v577, %v567
    %v582 = vmul.f32 %v578, %v569
    %v583 = vsub.f32 %v579, %v581
    %v584 = vsub.f32 %v580, %v582
    %v585 = vmul.f32 %v574, %v567
    %v586 = vmul.f32 %v575, %v569
    %v587 = vmul.f32 %v577, %v526
    %v588 = vmul.f32 %v578, %v528
    %v589 = vadd.f32 %v585, %v587
    %v590 = vadd.f32 %v586, %v588
    %s591 = sld [smem:[#allocation12]]
    %v592 = vstv %s591
    %v593 = vmul.f32 %v592, %v103
    %v594 = vmul.f32 %v592, %v104
    %v597 = vrot.slane %v583, 2
    %v598 = vrot.slane %v584, 2
    %v601 = vadd.f32 %v583, %v597
    %v602 = vadd.f32 %v584, %v598
    %v605 = vrot.slane %v589, 2
    %v606 = vrot.slane %v590, 2
    %v609 = vadd.f32 %v589, %v605
    %v610 = vadd.f32 %v590, %v606
    %s611 = sld [smem:[#allocation12 + $0x1]]
    %v612 = vstv %s611
    %v613 = vmul.f32 %v612, %v103
    %v614 = vmul.f32 %v612, %v104
    %v617 = vrot.slane %v613, 2
    %v618 = vrot.slane %v614, 2
    %v621 = vadd.f32 %v593, %v617
    %v622 = vadd.f32 %v594, %v618
    %v623 = vrot.slane %v583, 4
    %v624 = vrot.slane %v584, 4
    %v627 = vadd.f32 %v601, %v623
    %v628 = vadd.f32 %v602, %v624
    %v629 = vrot.slane %v589, 4
    %v630 = vrot.slane %v590, 4
    %v633 = vadd.f32 %v609, %v629
    %v634 = vadd.f32 %v610, %v630
    %s635 = sld [smem:[#allocation12 + $0x2]]
    %v636 = vstv %s635
    %v637 = vmul.f32 %v636, %v103
    %v638 = vmul.f32 %v636, %v104
    %v641 = vrot.slane %v637, 4
    %v642 = vrot.slane %v638, 4
    %v645 = vadd.f32 %v621, %v641
    %v646 = vadd.f32 %v622, %v642
    %v647 = vrot.slane %v583, 6
    %v648 = vrot.slane %v584, 6
    %v651 = vadd.f32 %v627, %v647
    %v652 = vadd.f32 %v628, %v648
    %v653 = vrot.slane %v589, 6
    %v654 = vrot.slane %v590, 6
    %v657 = vadd.f32 %v633, %v653
    %v658 = vadd.f32 %v634, %v654
    %s659 = sld [smem:[#allocation12 + $0x3]]
    %v660 = vstv %s659
    %v661 = vmul.f32 %v660, %v103
    %v662 = vmul.f32 %v660, %v104
    %v665 = vrot.slane %v661, 6
    %v666 = vrot.slane %v662, 6
    %v669 = vadd.f32 %v645, %v665
    %v670 = vadd.f32 %v646, %v666
    %s671 = scalar_lea.vmem [#allocation9], 8
    %v672 = vld [vmem:[%s671] sm:$0xff]
    %v673 = vunpack.c.l.bf16 %v672
    %v674 = vunpack.c.h.bf16 %v672
    %s675 = scalar_lea.vmem [#allocation11], 8
    %v676 = vld [vmem:[%s675] sm:$0xff]
    %v677 = vunpack.c.l.bf16 %v676
    %v678 = vunpack.c.h.bf16 %v676
    %v679 = vmul.f32 %v673, %v526
    %v680 = vmul.f32 %v674, %v528
    %v681 = vmul.f32 %v677, %v567
    %v682 = vmul.f32 %v678, %v569
    %v683 = vsub.f32 %v679, %v681
    %v684 = vsub.f32 %v680, %v682
    %v685 = vmul.f32 %v673, %v567
    %v686 = vmul.f32 %v674, %v569
    %v687 = vmul.f32 %v677, %v526
    %v688 = vmul.f32 %v678, %v528
    %v689 = vadd.f32 %v685, %v687
    %v690 = vadd.f32 %v686, %v688
    %s691 = sld [smem:[#allocation12 + $0x4]]
    %v692 = vstv %s691
    %v693 = vmul.f32 %v692, %v103
    %v694 = vmul.f32 %v692, %v104
    %v697 = vrot.slane %v683, 2
    %v698 = vrot.slane %v684, 2
    %v701 = vadd.f32 %v683, %v697
    %v702 = vadd.f32 %v684, %v698
    %v705 = vrot.slane %v689, 2
    %v706 = vrot.slane %v690, 2
    %v709 = vadd.f32 %v689, %v705
    %v710 = vadd.f32 %v690, %v706
    %s711 = sld [smem:[#allocation12 + $0x5]]
    %v712 = vstv %s711
    %v713 = vmul.f32 %v712, %v103
    %v714 = vmul.f32 %v712, %v104
    %v717 = vrot.slane %v713, 2
    %v718 = vrot.slane %v714, 2
    %v721 = vadd.f32 %v693, %v717
    %v722 = vadd.f32 %v694, %v718
    %v723 = vrot.slane %v683, 4
    %v724 = vrot.slane %v684, 4
    %v727 = vadd.f32 %v701, %v723
    %v728 = vadd.f32 %v702, %v724
    %v729 = vrot.slane %v689, 4
    %v730 = vrot.slane %v690, 4
    %v733 = vadd.f32 %v709, %v729
    %v734 = vadd.f32 %v710, %v730
    %s735 = sld [smem:[#allocation12 + $0x6]]
    %v736 = vstv %s735
    %v737 = vmul.f32 %v736, %v103
    %v738 = vmul.f32 %v736, %v104
    %v741 = vrot.slane %v737, 4
    %v742 = vrot.slane %v738, 4
    %v745 = vadd.f32 %v721, %v741
    %v746 = vadd.f32 %v722, %v742
    %v747 = vrot.slane %v683, 6
    %v748 = vrot.slane %v684, 6
    %v751 = vadd.f32 %v727, %v747
    %v752 = vadd.f32 %v728, %v748
    %v753 = vrot.slane %v689, 6
    %v754 = vrot.slane %v690, 6
    %v757 = vadd.f32 %v733, %v753
    %v758 = vadd.f32 %v734, %v754
    %s759 = sld [smem:[#allocation12 + $0x7]]
    %v760 = vstv %s759
    %v761 = vmul.f32 %v760, %v103
    %v762 = vmul.f32 %v760, %v104
    %v765 = vrot.slane %v761, 6
    %v766 = vrot.slane %v762, 6
    %v769 = vadd.f32 %v745, %v765
    %v770 = vadd.f32 %v746, %v766
    %s771 = scalar_lea.vmem [#allocation9], 16
    %v772 = vld [vmem:[%s771] sm:$0xff]
    %v773 = vunpack.c.l.bf16 %v772
    %v774 = vunpack.c.h.bf16 %v772
    %s775 = scalar_lea.vmem [#allocation11], 16
    %v776 = vld [vmem:[%s775] sm:$0xff]
    %v777 = vunpack.c.l.bf16 %v776
    %v778 = vunpack.c.h.bf16 %v776
    %v779 = vmul.f32 %v773, %v526
    %v780 = vmul.f32 %v774, %v528
    %v781 = vmul.f32 %v777, %v567
    %v782 = vmul.f32 %v778, %v569
    %v783 = vsub.f32 %v779, %v781
    %v784 = vsub.f32 %v780, %v782
    %v785 = vmul.f32 %v773, %v567
    %v786 = vmul.f32 %v774, %v569
    %v787 = vmul.f32 %v777, %v526
    %v788 = vmul.f32 %v778, %v528
    %v789 = vadd.f32 %v785, %v787
    %v790 = vadd.f32 %v786, %v788
    %s791 = sld [smem:[#allocation12 + $0x8]]
    %v792 = vstv %s791
    %v793 = vmul.f32 %v792, %v103
    %v794 = vmul.f32 %v792, %v104
    %v797 = vrot.slane %v783, 2
    %v798 = vrot.slane %v784, 2
    %v801 = vadd.f32 %v783, %v797
    %v802 = vadd.f32 %v784, %v798
    %v805 = vrot.slane %v789, 2
    %v806 = vrot.slane %v790, 2
    %v809 = vadd.f32 %v789, %v805
    %v810 = vadd.f32 %v790, %v806
    %s811 = sld [smem:[#allocation12 + $0x9]]
    %v812 = vstv %s811
    %v813 = vmul.f32 %v812, %v103
    %v814 = vmul.f32 %v812, %v104
    %v817 = vrot.slane %v813, 2
    %v818 = vrot.slane %v814, 2
    %v821 = vadd.f32 %v793, %v817
    %v822 = vadd.f32 %v794, %v818
    %v823 = vrot.slane %v783, 4
    %v824 = vrot.slane %v784, 4
    %v827 = vadd.f32 %v801, %v823
    %v828 = vadd.f32 %v802, %v824
    %v829 = vrot.slane %v789, 4
    %v830 = vrot.slane %v790, 4
    %v833 = vadd.f32 %v809, %v829
    %v834 = vadd.f32 %v810, %v830
    %s835 = sld [smem:[#allocation12 + $0xa]]
    %v836 = vstv %s835
    %v837 = vmul.f32 %v836, %v103
    %v838 = vmul.f32 %v836, %v104
    %v841 = vrot.slane %v837, 4
    %v842 = vrot.slane %v838, 4
    %v845 = vadd.f32 %v821, %v841
    %v846 = vadd.f32 %v822, %v842
    %v847 = vrot.slane %v783, 6
    %v848 = vrot.slane %v784, 6
    %v851 = vadd.f32 %v827, %v847
    %v852 = vadd.f32 %v828, %v848
    %v853 = vrot.slane %v789, 6
    %v854 = vrot.slane %v790, 6
    %v857 = vadd.f32 %v833, %v853
    %v858 = vadd.f32 %v834, %v854
    %s859 = sld [smem:[#allocation12 + $0xb]]
    %v860 = vstv %s859
    %v861 = vmul.f32 %v860, %v103
    %v862 = vmul.f32 %v860, %v104
    %v865 = vrot.slane %v861, 6
    %v866 = vrot.slane %v862, 6
    %v869 = vadd.f32 %v845, %v865
    %v870 = vadd.f32 %v846, %v866
    %s871 = scalar_lea.vmem [#allocation9], 24
    %v872 = vld [vmem:[%s871] sm:$0xff]
    %v873 = vunpack.c.l.bf16 %v872
    %v874 = vunpack.c.h.bf16 %v872
    %s875 = scalar_lea.vmem [#allocation11], 24
    %v876 = vld [vmem:[%s875] sm:$0xff]
    %v877 = vunpack.c.l.bf16 %v876
    %v878 = vunpack.c.h.bf16 %v876
    %v879 = vmul.f32 %v873, %v526
    %v880 = vmul.f32 %v874, %v528
    %v881 = vmul.f32 %v877, %v567
    %v882 = vmul.f32 %v878, %v569
    %v883 = vsub.f32 %v879, %v881
    %v884 = vsub.f32 %v880, %v882
    %v885 = vmul.f32 %v873, %v567
    %v886 = vmul.f32 %v874, %v569
    %v887 = vmul.f32 %v877, %v526
    %v888 = vmul.f32 %v878, %v528
    %v889 = vadd.f32 %v885, %v887
    %v890 = vadd.f32 %v886, %v888
    %s891 = sld [smem:[#allocation12 + $0xc]]
    %v892 = vstv %s891
    %v893 = vmul.f32 %v892, %v103
    %v894 = vmul.f32 %v892, %v104
    %v897 = vrot.slane %v883, 2
    %v898 = vrot.slane %v884, 2
    %v901 = vadd.f32 %v883, %v897
    %v902 = vadd.f32 %v884, %v898
    %v905 = vrot.slane %v889, 2
    %v906 = vrot.slane %v890, 2
    %v909 = vadd.f32 %v889, %v905
    %v910 = vadd.f32 %v890, %v906
    %s911 = sld [smem:[#allocation12 + $0xd]]
    %v912 = vstv %s911
    %v913 = vmul.f32 %v912, %v103
    %v914 = vmul.f32 %v912, %v104
    %v917 = vrot.slane %v913, 2
    %v918 = vrot.slane %v914, 2
    %v921 = vadd.f32 %v893, %v917
    %v922 = vadd.f32 %v894, %v918
    %v923 = vrot.slane %v883, 4
    %v924 = vrot.slane %v884, 4
    %v927 = vadd.f32 %v901, %v923
    %v928 = vadd.f32 %v902, %v924
    %v929 = vrot.slane %v889, 4
    %v930 = vrot.slane %v890, 4
    %v933 = vadd.f32 %v909, %v929
    %v934 = vadd.f32 %v910, %v930
    %s935 = sld [smem:[#allocation12 + $0xe]]
    %v936 = vstv %s935
    %v937 = vmul.f32 %v936, %v103
    %v938 = vmul.f32 %v936, %v104
    %v941 = vrot.slane %v937, 4
    %v942 = vrot.slane %v938, 4
    %v945 = vadd.f32 %v921, %v941
    %v946 = vadd.f32 %v922, %v942
    %v947 = vrot.slane %v883, 6
    %v948 = vrot.slane %v884, 6
    %v951 = vadd.f32 %v927, %v947
    %v952 = vadd.f32 %v928, %v948
    %v953 = vrot.slane %v889, 6
    %v954 = vrot.slane %v890, 6
    %v957 = vadd.f32 %v933, %v953
    %v958 = vadd.f32 %v934, %v954
    %s959 = sld [smem:[#allocation12 + $0xf]]
    %v960 = vstv %s959
    %v961 = vmul.f32 %v960, %v103
    %v962 = vmul.f32 %v960, %v104
    %v965 = vrot.slane %v961, 6
    %v966 = vrot.slane %v962, 6
    %v969 = vadd.f32 %v945, %v965
    %v970 = vadd.f32 %v946, %v966
    %v973 = vrot.slane %v751, 6
    %v974 = vrot.slane %v752, 6
    %v979 = vrot.slane %v851, 4
    %v980 = vrot.slane %v852, 4
    %v985 = vrot.slane %v951, 2
    %v986 = vrot.slane %v952, 2
    %vm989 = vcmask 1041408
    %v990 = vsel %vm989, %v651, %v973
    %v991 = vsel %vm989, %v652, %v974
    %vm992 = vcmask 1043456
    %v993 = vsel %vm992, %v990, %v979
    %v994 = vsel %vm992, %v991, %v980
    %vm995 = vcmask 1045504
    %v996 = vsel %vm995, %v993, %v985
    %v997 = vsel %vm995, %v994, %v986
    %v1000 = vrot.slane %v757, 6
    %v1001 = vrot.slane %v758, 6
    %v1006 = vrot.slane %v857, 4
    %v1007 = vrot.slane %v858, 4
    %v1012 = vrot.slane %v957, 2
    %v1013 = vrot.slane %v958, 2
    %v1016 = vsel %vm989, %v657, %v1000
    %v1017 = vsel %vm989, %v658, %v1001
    %v1018 = vsel %vm992, %v1016, %v1006
    %v1019 = vsel %vm992, %v1017, %v1007
    %v1020 = vsel %vm995, %v1018, %v1012
    %v1021 = vsel %vm995, %v1019, %v1013
    %v1024 = vrot.slane %v769, 6
    %v1025 = vrot.slane %v770, 6
    %v1030 = vrot.slane %v869, 4
    %v1031 = vrot.slane %v870, 4
    %v1036 = vrot.slane %v969, 2
    %v1037 = vrot.slane %v970, 2
    %v1040 = vsel %vm989, %v669, %v1024
    %v1041 = vsel %vm989, %v670, %v1025
    %v1042 = vsel %vm992, %v1040, %v1030
    %v1043 = vsel %vm992, %v1041, %v1031
    %v1044 = vsel %vm995, %v1042, %v1036
    %v1045 = vsel %vm995, %v1043, %v1037
    %v1046 = vpack.c.bf16 %v996, %v996
    %v1047 = vpack.c.bf16 %v997, %v997
    %v1048 = vpack.c.bf16 %v1020, %v1020
    %v1049 = vpack.c.bf16 %v1021, %v1021
    %v1050 = vld [vmem:[#allocation8] sm:$0xff]
    %v1051 = vld [vmem:[#allocation8 + $0x8] sm:$0xff]
    %v1052 = vld [vmem:[#allocation8 + $0x10] sm:$0xff]
    %v1053 = vld [vmem:[#allocation8 + $0x18] sm:$0xff]
    %v1054 = vld [vmem:[#allocation8 + $0x20] sm:$0xff]
    %v1055 = vld [vmem:[#allocation8 + $0x28] sm:$0xff]
    %v1056 = vld [vmem:[#allocation8 + $0x30] sm:$0xff]
    %v1057 = vld [vmem:[#allocation8 + $0x38] sm:$0xff]
    %v1058 = vld [vmem:[#allocation8 + $0x40] sm:$0xff]
    %v1059 = vld [vmem:[#allocation8 + $0x48] sm:$0xff]
    %v1060 = vld [vmem:[#allocation8 + $0x50] sm:$0xff]
    %v1061 = vld [vmem:[#allocation8 + $0x58] sm:$0xff]
    %v1062 = vld [vmem:[#allocation8 + $0x60] sm:$0xff]
    %v1063 = vld [vmem:[#allocation8 + $0x68] sm:$0xff]
    %v1064 = vld [vmem:[#allocation8 + $0x70] sm:$0xff]
    %v1065 = vld [vmem:[#allocation8 + $0x78] sm:$0xff]
    %v1066 = vld [vmem:[#allocation8 + $0x80] sm:$0xff]
    %v1067 = vld [vmem:[#allocation8 + $0x88] sm:$0xff]
    %v1068 = vld [vmem:[#allocation8 + $0x90] sm:$0xff]
    %v1069 = vld [vmem:[#allocation8 + $0x98] sm:$0xff]
    %v1070 = vld [vmem:[#allocation8 + $0xa0] sm:$0xff]
    %v1071 = vld [vmem:[#allocation8 + $0xa8] sm:$0xff]
    %v1072 = vld [vmem:[#allocation8 + $0xb0] sm:$0xff]
    %v1073 = vld [vmem:[#allocation8 + $0xb8] sm:$0xff]
    %v1074 = vld [vmem:[#allocation8 + $0xc0] sm:$0xff]
    %v1075 = vld [vmem:[#allocation8 + $0xc8] sm:$0xff]
    %v1076 = vld [vmem:[#allocation8 + $0xd0] sm:$0xff]
    %v1077 = vld [vmem:[#allocation8 + $0xd8] sm:$0xff]
    %v1078 = vld [vmem:[#allocation8 + $0xe0] sm:$0xff]
    %v1079 = vld [vmem:[#allocation8 + $0xe8] sm:$0xff]
    %v1080 = vld [vmem:[#allocation8 + $0xf0] sm:$0xff]
    %v1081 = vld [vmem:[#allocation8 + $0xf8] sm:$0xff]
    %v1082 = vld [vmem:[#allocation8 + $0x100] sm:$0xff]
    %v1083 = vld [vmem:[#allocation8 + $0x108] sm:$0xff]
    %v1084 = vld [vmem:[#allocation8 + $0x110] sm:$0xff]
    %v1085 = vld [vmem:[#allocation8 + $0x118] sm:$0xff]
    %v1086 = vld [vmem:[#allocation8 + $0x120] sm:$0xff]
    %v1087 = vld [vmem:[#allocation8 + $0x128] sm:$0xff]
    %v1088 = vld [vmem:[#allocation8 + $0x130] sm:$0xff]
    %v1089 = vld [vmem:[#allocation8 + $0x138] sm:$0xff]
    %v1090 = vld [vmem:[#allocation8 + $0x140] sm:$0xff]
    %v1091 = vld [vmem:[#allocation8 + $0x148] sm:$0xff]
    %v1092 = vld [vmem:[#allocation8 + $0x150] sm:$0xff]
    %v1093 = vld [vmem:[#allocation8 + $0x158] sm:$0xff]
    %v1094 = vld [vmem:[#allocation8 + $0x160] sm:$0xff]
    %v1095 = vld [vmem:[#allocation8 + $0x168] sm:$0xff]
    %v1096 = vld [vmem:[#allocation8 + $0x170] sm:$0xff]
    %v1097 = vld [vmem:[#allocation8 + $0x178] sm:$0xff]
    %v1098 = vld [vmem:[#allocation8 + $0x180] sm:$0xff]
    %v1099 = vld [vmem:[#allocation8 + $0x188] sm:$0xff]
    %v1100 = vld [vmem:[#allocation8 + $0x190] sm:$0xff]
    %v1101 = vld [vmem:[#allocation8 + $0x198] sm:$0xff]
    %v1102 = vld [vmem:[#allocation8 + $0x1a0] sm:$0xff]
    %v1103 = vld [vmem:[#allocation8 + $0x1a8] sm:$0xff]
    %v1104 = vld [vmem:[#allocation8 + $0x1b0] sm:$0xff]
    %v1105 = vld [vmem:[#allocation8 + $0x1b8] sm:$0xff]
    %v1106 = vld [vmem:[#allocation8 + $0x1c0] sm:$0xff]
    %v1107 = vld [vmem:[#allocation8 + $0x1c8] sm:$0xff]
    %v1108 = vld [vmem:[#allocation8 + $0x1d0] sm:$0xff]
    %v1109 = vld [vmem:[#allocation8 + $0x1d8] sm:$0xff]
    %v1110 = vld [vmem:[#allocation8 + $0x1e0] sm:$0xff]
    %v1111 = vld [vmem:[#allocation8 + $0x1e8] sm:$0xff]
    %v1112 = vld [vmem:[#allocation8 + $0x1f0] sm:$0xff]
    %v1113 = vld [vmem:[#allocation8 + $0x1f8] sm:$0xff]
    %v1178 = vunpack.c.l.b16 %v1050
    %v1179 = vunpack.c.h.b16 %v1050
    %v1180 = vunpack.c.l.b16 %v1051
    %v1181 = vunpack.c.h.b16 %v1051
    %v1182 = vunpack.c.l.b16 %v1052
    %v1183 = vunpack.c.h.b16 %v1052
    %v1184 = vunpack.c.l.b16 %v1053
    %v1185 = vunpack.c.h.b16 %v1053
    %v1186 = vunpack.c.l.b16 %v1054
    %v1187 = vunpack.c.h.b16 %v1054
    %v1188 = vunpack.c.l.b16 %v1055
    %v1189 = vunpack.c.h.b16 %v1055
    %v1190 = vunpack.c.l.b16 %v1056
    %v1191 = vunpack.c.h.b16 %v1056
    %v1192 = vunpack.c.l.b16 %v1057
    %v1193 = vunpack.c.h.b16 %v1057
    %v1194 = vunpack.c.l.b16 %v1058
    %v1195 = vunpack.c.h.b16 %v1058
    %v1196 = vunpack.c.l.b16 %v1059
    %v1197 = vunpack.c.h.b16 %v1059
    %v1198 = vunpack.c.l.b16 %v1060
    %v1199 = vunpack.c.h.b16 %v1060
    %v1200 = vunpack.c.l.b16 %v1061
    %v1201 = vunpack.c.h.b16 %v1061
    %v1202 = vunpack.c.l.b16 %v1062
    %v1203 = vunpack.c.h.b16 %v1062
    %v1204 = vunpack.c.l.b16 %v1063
    %v1205 = vunpack.c.h.b16 %v1063
    %v1206 = vunpack.c.l.b16 %v1064
    %v1207 = vunpack.c.h.b16 %v1064
    %v1208 = vunpack.c.l.b16 %v1065
    %v1209 = vunpack.c.h.b16 %v1065
    %v1210 = vunpack.c.l.b16 %v1066
    %v1211 = vunpack.c.h.b16 %v1066
    %v1212 = vunpack.c.l.b16 %v1067
    %v1213 = vunpack.c.h.b16 %v1067
    %v1214 = vunpack.c.l.b16 %v1068
    %v1215 = vunpack.c.h.b16 %v1068
    %v1216 = vunpack.c.l.b16 %v1069
    %v1217 = vunpack.c.h.b16 %v1069
    %v1218 = vunpack.c.l.b16 %v1070
    %v1219 = vunpack.c.h.b16 %v1070
    %v1220 = vunpack.c.l.b16 %v1071
    %v1221 = vunpack.c.h.b16 %v1071
    %v1222 = vunpack.c.l.b16 %v1072
    %v1223 = vunpack.c.h.b16 %v1072
    %v1224 = vunpack.c.l.b16 %v1073
    %v1225 = vunpack.c.h.b16 %v1073
    %v1226 = vunpack.c.l.b16 %v1074
    %v1227 = vunpack.c.h.b16 %v1074
    %v1228 = vunpack.c.l.b16 %v1075
    %v1229 = vunpack.c.h.b16 %v1075
    %v1230 = vunpack.c.l.b16 %v1076
    %v1231 = vunpack.c.h.b16 %v1076
    %v1232 = vunpack.c.l.b16 %v1077
    %v1233 = vunpack.c.h.b16 %v1077
    %v1234 = vunpack.c.l.b16 %v1078
    %v1235 = vunpack.c.h.b16 %v1078
    %v1236 = vunpack.c.l.b16 %v1079
    %v1237 = vunpack.c.h.b16 %v1079
    %v1238 = vunpack.c.l.b16 %v1080
    %v1239 = vunpack.c.h.b16 %v1080
    %v1240 = vunpack.c.l.b16 %v1081
    %v1241 = vunpack.c.h.b16 %v1081
    %v1242 = vunpack.c.l.b16 %v1082
    %v1243 = vunpack.c.h.b16 %v1082
    %v1244 = vunpack.c.l.b16 %v1083
    %v1245 = vunpack.c.h.b16 %v1083
    %v1246 = vunpack.c.l.b16 %v1084
    %v1247 = vunpack.c.h.b16 %v1084
    %v1248 = vunpack.c.l.b16 %v1085
    %v1249 = vunpack.c.h.b16 %v1085
    %v1250 = vunpack.c.l.b16 %v1086
    %v1251 = vunpack.c.h.b16 %v1086
    %v1252 = vunpack.c.l.b16 %v1087
    %v1253 = vunpack.c.h.b16 %v1087
    %v1254 = vunpack.c.l.b16 %v1088
    %v1255 = vunpack.c.h.b16 %v1088
    %v1256 = vunpack.c.l.b16 %v1089
    %v1257 = vunpack.c.h.b16 %v1089
    %v1258 = vunpack.c.l.b16 %v1090
    %v1259 = vunpack.c.h.b16 %v1090
    %v1260 = vunpack.c.l.b16 %v1091
    %v1261 = vunpack.c.h.b16 %v1091
    %v1262 = vunpack.c.l.b16 %v1092
    %v1263 = vunpack.c.h.b16 %v1092
    %v1264 = vunpack.c.l.b16 %v1093
    %v1265 = vunpack.c.h.b16 %v1093
    %v1266 = vunpack.c.l.b16 %v1094
    %v1267 = vunpack.c.h.b16 %v1094
    %v1268 = vunpack.c.l.b16 %v1095
    %v1269 = vunpack.c.h.b16 %v1095
    %v1270 = vunpack.c.l.b16 %v1096
    %v1271 = vunpack.c.h.b16 %v1096
    %v1272 = vunpack.c.l.b16 %v1097
    %v1273 = vunpack.c.h.b16 %v1097
    %v1274 = vunpack.c.l.b16 %v1098
    %v1275 = vunpack.c.h.b16 %v1098
    %v1276 = vunpack.c.l.b16 %v1099
    %v1277 = vunpack.c.h.b16 %v1099
    %v1278 = vunpack.c.l.b16 %v1100
    %v1279 = vunpack.c.h.b16 %v1100
    %v1280 = vunpack.c.l.b16 %v1101
    %v1281 = vunpack.c.h.b16 %v1101
    %v1282 = vunpack.c.l.b16 %v1102
    %v1283 = vunpack.c.h.b16 %v1102
    %v1284 = vunpack.c.l.b16 %v1103
    %v1285 = vunpack.c.h.b16 %v1103
    %v1286 = vunpack.c.l.b16 %v1104
    %v1287 = vunpack.c.h.b16 %v1104
    %v1288 = vunpack.c.l.b16 %v1105
    %v1289 = vunpack.c.h.b16 %v1105
    %v1290 = vunpack.c.l.b16 %v1106
    %v1291 = vunpack.c.h.b16 %v1106
    %v1292 = vunpack.c.l.b16 %v1107
    %v1293 = vunpack.c.h.b16 %v1107
    %v1294 = vunpack.c.l.b16 %v1108
    %v1295 = vunpack.c.h.b16 %v1108
    %v1296 = vunpack.c.l.b16 %v1109
    %v1297 = vunpack.c.h.b16 %v1109
    %v1298 = vunpack.c.l.b16 %v1110
    %v1299 = vunpack.c.h.b16 %v1110
    %v1300 = vunpack.c.l.b16 %v1111
    %v1301 = vunpack.c.h.b16 %v1111
    %v1302 = vunpack.c.l.b16 %v1112
    %v1303 = vunpack.c.h.b16 %v1112
    %v1304 = vunpack.c.l.b16 %v1113
    %v1305 = vunpack.c.h.b16 %v1113
    %v1306 = vpack.c.b16 %v1180, %v1178
    %v1307 = vpack.c.b16 %v1181, %v1179
    %v1308 = vpack.c.b16 %v1184, %v1182
    %v1309 = vpack.c.b16 %v1185, %v1183
    %v1310 = vpack.c.b16 %v1188, %v1186
    %v1311 = vpack.c.b16 %v1189, %v1187
    %v1312 = vpack.c.b16 %v1192, %v1190
    %v1313 = vpack.c.b16 %v1193, %v1191
    %v1314 = vpack.c.b16 %v1196, %v1194
    %v1315 = vpack.c.b16 %v1197, %v1195
    %v1316 = vpack.c.b16 %v1200, %v1198
    %v1317 = vpack.c.b16 %v1201, %v1199
    %v1318 = vpack.c.b16 %v1204, %v1202
    %v1319 = vpack.c.b16 %v1205, %v1203
    %v1320 = vpack.c.b16 %v1208, %v1206
    %v1321 = vpack.c.b16 %v1209, %v1207
    %v1322 = vpack.c.b16 %v1212, %v1210
    %v1323 = vpack.c.b16 %v1213, %v1211
    %v1324 = vpack.c.b16 %v1216, %v1214
    %v1325 = vpack.c.b16 %v1217, %v1215
    %v1326 = vpack.c.b16 %v1220, %v1218
    %v1327 = vpack.c.b16 %v1221, %v1219
    %v1328 = vpack.c.b16 %v1224, %v1222
    %v1329 = vpack.c.b16 %v1225, %v1223
    %v1330 = vpack.c.b16 %v1228, %v1226
    %v1331 = vpack.c.b16 %v1229, %v1227
    %v1332 = vpack.c.b16 %v1232, %v1230
    %v1333 = vpack.c.b16 %v1233, %v1231
    %v1334 = vpack.c.b16 %v1236, %v1234
    %v1335 = vpack.c.b16 %v1237, %v1235
    %v1336 = vpack.c.b16 %v1240, %v1238
    %v1337 = vpack.c.b16 %v1241, %v1239
    %v1338 = vpack.c.b16 %v1244, %v1242
    %v1339 = vpack.c.b16 %v1245, %v1243
    %v1340 = vpack.c.b16 %v1248, %v1246
    %v1341 = vpack.c.b16 %v1249, %v1247
    %v1342 = vpack.c.b16 %v1252, %v1250
    %v1343 = vpack.c.b16 %v1253, %v1251
    %v1344 = vpack.c.b16 %v1256, %v1254
    %v1345 = vpack.c.b16 %v1257, %v1255
    %v1346 = vpack.c.b16 %v1260, %v1258
    %v1347 = vpack.c.b16 %v1261, %v1259
    %v1348 = vpack.c.b16 %v1264, %v1262
    %v1349 = vpack.c.b16 %v1265, %v1263
    %v1350 = vpack.c.b16 %v1268, %v1266
    %v1351 = vpack.c.b16 %v1269, %v1267
    %v1352 = vpack.c.b16 %v1272, %v1270
    %v1353 = vpack.c.b16 %v1273, %v1271
    %v1354 = vpack.c.b16 %v1276, %v1274
    %v1355 = vpack.c.b16 %v1277, %v1275
    %v1356 = vpack.c.b16 %v1280, %v1278
    %v1357 = vpack.c.b16 %v1281, %v1279
    %v1358 = vpack.c.b16 %v1284, %v1282
    %v1359 = vpack.c.b16 %v1285, %v1283
    %v1360 = vpack.c.b16 %v1288, %v1286
    %v1361 = vpack.c.b16 %v1289, %v1287
    %v1362 = vpack.c.b16 %v1292, %v1290
    %v1363 = vpack.c.b16 %v1293, %v1291
    %v1364 = vpack.c.b16 %v1296, %v1294
    %v1365 = vpack.c.b16 %v1297, %v1295
    %v1366 = vpack.c.b16 %v1300, %v1298
    %v1367 = vpack.c.b16 %v1301, %v1299
    %v1368 = vpack.c.b16 %v1304, %v1302
    %v1369 = vpack.c.b16 %v1305, %v1303
    %1434 = vmatprep.subr.bf16.mxu0 %v1307
    %1435 = vmatpush1.bf16.msra.mxu0 %v1306
    %1436 = vmatprep.subr.bf16.mxu0 %v1309
    %1437 = vmatpush1.bf16.msra.mxu0 %v1308
    %1438 = vmatprep.subr.bf16.mxu0 %v1311
    %1439 = vmatpush1.bf16.msra.mxu0 %v1310
    %1440 = vmatprep.subr.bf16.mxu0 %v1313
    %1441 = vmatpush1.bf16.msra.mxu0 %v1312
    %1442 = vmatprep.subr.bf16.mxu0 %v1315
    %1443 = vmatpush1.bf16.msra.mxu0 %v1314
    %1444 = vmatprep.subr.bf16.mxu0 %v1317
    %1445 = vmatpush1.bf16.msra.mxu0 %v1316
    %1446 = vmatprep.subr.bf16.mxu0 %v1319
    %1447 = vmatpush1.bf16.msra.mxu0 %v1318
    %1448 = vmatprep.subr.bf16.mxu0 %v1321
    %1449 = vmatpush1.bf16.msra.mxu0 %v1320
    %1450 = vmatprep.subr.bf16.mxu0 %v1323
    %1451 = vmatpush1.bf16.msra.mxu0 %v1322
    %1452 = vmatprep.subr.bf16.mxu0 %v1325
    %1453 = vmatpush1.bf16.msra.mxu0 %v1324
    %1454 = vmatprep.subr.bf16.mxu0 %v1327
    %1455 = vmatpush1.bf16.msra.mxu0 %v1326
    %1456 = vmatprep.subr.bf16.mxu0 %v1329
    %1457 = vmatpush1.bf16.msra.mxu0 %v1328
    %1458 = vmatprep.subr.bf16.mxu0 %v1331
    %1459 = vmatpush1.bf16.msra.mxu0 %v1330
    %1460 = vmatprep.subr.bf16.mxu0 %v1333
    %1461 = vmatpush1.bf16.msra.mxu0 %v1332
    %1462 = vmatprep.subr.bf16.mxu0 %v1335
    %1463 = vmatpush1.bf16.msra.mxu0 %v1334
    %1464 = vmatprep.subr.bf16.mxu0 %v1337
    %1465 = vmatpush1.bf16.msra.mxu0 %v1336
    %1466 = vmatprep.mubr.bf16.mxu0 %v1047
    %1467 = vmatmul.mubr.bf16.gmra.mrb[0].mxu0 %v1046
    %v1468 = vpop.f32.mrb[0].mxu0
    %v1469 = vadd.f32 %v1044, %v1468
    %v1470 = vpop.f32.mrb[0].mxu0
    %v1471 = vadd.f32 %v1045, %v1470
    %v1472 = vpop.f32.mrb[0].mxu0
    %v1473 = vpop.f32.mrb[0].mxu0
    %1474 = vdwg.mxu0
    %1475 = vmatprep.subr.bf16.mxu0 %v1339
    %1476 = vmatpush1.bf16.msra.mxu0 %v1338
    %1477 = vmatprep.subr.bf16.mxu0 %v1341
    %1478 = vmatpush1.bf16.msra.mxu0 %v1340
    %1479 = vmatprep.subr.bf16.mxu0 %v1343
    %1480 = vmatpush1.bf16.msra.mxu0 %v1342
    %1481 = vmatprep.subr.bf16.mxu0 %v1345
    %1482 = vmatpush1.bf16.msra.mxu0 %v1344
    %1483 = vmatprep.subr.bf16.mxu0 %v1347
    %1484 = vmatpush1.bf16.msra.mxu0 %v1346
    %1485 = vmatprep.subr.bf16.mxu0 %v1349
    %1486 = vmatpush1.bf16.msra.mxu0 %v1348
    %1487 = vmatprep.subr.bf16.mxu0 %v1351
    %1488 = vmatpush1.bf16.msra.mxu0 %v1350
    %1489 = vmatprep.subr.bf16.mxu0 %v1353
    %1490 = vmatpush1.bf16.msra.mxu0 %v1352
    %1491 = vmatprep.subr.bf16.mxu0 %v1355
    %1492 = vmatpush1.bf16.msra.mxu0 %v1354
    %1493 = vmatprep.subr.bf16.mxu0 %v1357
    %1494 = vmatpush1.bf16.msra.mxu0 %v1356
    %1495 = vmatprep.subr.bf16.mxu0 %v1359
    %1496 = vmatpush1.bf16.msra.mxu0 %v1358
    %1497 = vmatprep.subr.bf16.mxu0 %v1361
    %1498 = vmatpush1.bf16.msra.mxu0 %v1360
    %1499 = vmatprep.subr.bf16.mxu0 %v1363
    %1500 = vmatpush1.bf16.msra.mxu0 %v1362
    %1501 = vmatprep.subr.bf16.mxu0 %v1365
    %1502 = vmatpush1.bf16.msra.mxu0 %v1364
    %1503 = vmatprep.subr.bf16.mxu0 %v1367
    %1504 = vmatpush1.bf16.msra.mxu0 %v1366
    %1505 = vmatprep.subr.bf16.mxu0 %v1369
    %1506 = vmatpush1.bf16.msra.mxu0 %v1368
    %1507 = vmatprep.mubr.bf16.mxu0 %v1049
    %1508 = vmatmul.mubr.bf16.gmra.mrb[0].mxu0 %v1048
    %v1509 = vpop.f32.mrb[0].mxu0
    %v1510 = vadd.f32 %v1469, %v1509
    %v1511 = vpop.f32.mrb[0].mxu0
    %v1512 = vadd.f32 %v1471, %v1511
    %v1513 = vpop.f32.mrb[0].mxu0
    %v1514 = vpop.f32.mrb[0].mxu0
    %1515 = vdwg.mxu0
    %v1516 = vmul.f32 %v1510, 0.5
    %v1517 = vmul.f32 %v1512, 0.5
    %v1518 = vmul.f32 %v1510, 0.70710677
    %v1519 = vmul.f32 %v1512, 0.70710677
    %vm1520 = vcmp.ge.f32.partialorder %v1518, 0.0
    %vm1521 = vcmp.ge.f32.partialorder %v1519, 0.0
    %v1522 = vsel %vm1520, 1.0, -1.0
    %v1523 = vsel %vm1521, 1.0, -1.0
    %v1524 = vand.u32 2147483647, %v1518
    %v1525 = vand.u32 2147483647, %v1519
    %v1526 = vmul.f32 %v1524, 0.3275911
    %v1527 = vmul.f32 %v1525, 0.3275911
    %v1528 = vadd.f32 %v1526, 1.0
    %v1529 = vadd.f32 %v1527, 1.0
    %v1530 = vrcp.pop %v1528
    %v1531 = vmul.f32 1.0, %v1530
    %v1532 = vrcp.pop %v1529
    %v1533 = vmul.f32 1.0, %v1532
    %v1534 = vmul.f32 %v1531, 1.0614054
    %v1535 = vmul.f32 %v1533, 1.0614054
    %v1536 = vadd.f32 %v1534, -1.4531521
    %v1537 = vadd.f32 %v1535, -1.4531521
    %v1538 = vmul.f32 %v1536, %v1531
    %v1539 = vmul.f32 %v1537, %v1533
    %v1540 = vadd.f32 %v1538, 1.4214138
    %v1541 = vadd.f32 %v1539, 1.4214138
    %v1542 = vmul.f32 %v1540, %v1531
    %v1543 = vmul.f32 %v1541, %v1533
    %v1544 = vadd.f32 %v1542, -0.28449672
    %v1545 = vadd.f32 %v1543, -0.28449672
    %v1546 = vmul.f32 %v1544, %v1531
    %v1547 = vmul.f32 %v1545, %v1533
    %v1548 = vadd.f32 %v1546, 0.2548296
    %v1549 = vadd.f32 %v1547, 0.2548296
    %v1550 = vmul.f32 %v1548, %v1531
    %v1551 = vmul.f32 %v1549, %v1533
    %v1552 = vsub.f32 0.0, %v1524
    %v1553 = vsub.f32 0.0, %v1525
    %v1554 = vmul.f32 %v1552, %v1524
    %v1555 = vmul.f32 %v1553, %v1525
    %v1556 = vmul.f32 %v1554, 1.442695
    %v1557 = vpow.pop %v1556
    %v1558 = vmul.f32 %v1555, 1.442695
    %v1559 = vpow.pop %v1558
    %v1560 = vmul.f32 %v1550, %v1557
    %v1561 = vmul.f32 %v1551, %v1559
    %v1562 = vsub.f32 1.0, %v1560
    %v1563 = vsub.f32 1.0, %v1561
    %v1564 = vmul.f32 %v1522, %v1562
    %v1565 = vmul.f32 %v1523, %v1563
    %v1566 = vadd.f32 %v1564, 1.0
    %v1567 = vadd.f32 %v1565, 1.0
    %v1568 = vmul.f32 %v1516, %v1566
    %v1569 = vmul.f32 %v1517, %v1567
    %v1570 = vadd.f32 %v1568, %v103
    %v1571 = vadd.f32 %v1569, %v104
    %1572 = vst [vmem:[#allocation13] sm:$0xff] %v1570
    %1573 = vst [vmem:[#allocation13 + $0x8] sm:$0xff] %v1571
    // Predicated region
    $region50: #{tpu_custom_call.1} parent=1 // pred_check
      _
    $region51: #{tpu_custom_call.1} parent=1 // pred_check_branch
      %1575 = sbr.rel (0) target = $region53
    $region52: #{tpu_custom_call.1} parent=1 // pred_region
      %s1577 = ssub.s32 256, 256
      %1578 = vsyncadd [#allocation4], %s1577
      %s1580 = sshll.u32 [#allocation13], 4
      %s1581 = int_to_ptr.vmem [resolvable:$true] %s1580
      %1583 = dma.vmem_to_hbm [thread:$0]  %s1581, 256, %s6, [#allocation4]
    $region53: #{tpu_custom_call.1} parent=1 // pred_fallthru
      _
    // Predicated region
    $region54: #{tpu_custom_call.1} parent=1 // pred_check
      _
    $region55: #{tpu_custom_call.1} parent=1 // pred_check_branch
      %1585 = sbr.rel (0) target = $region57
    $region56: #{tpu_custom_call.1} parent=1 // pred_region
      %1586 = dma.done [#allocation4], 256
    $region57: #{tpu_custom_call.1} parent=1 // pred_fallthru
      _
    %1587 = vsyncpa [#allocation3], 1
    %1588 = vsyncpa [#allocation7], 1
    %1589 = vsyncpa [#allocation10], 1
    %1590 = vsyncpa [#allocation4], 1
    %1591 = vsyncpa [#allocation5], 1

</llo_original>
